<compile_context>
chip_gen: v7x
topology: tpu7x:2x2x1
jax: 0.10.0
libtpu: 0.0.40
codegen_flags: <defaults>
</compile_context>

<pallas_src>
import jax
import jax.numpy as jnp
from jax import lax
from jax.experimental import pallas as pl
from jax.experimental.pallas import tpu as pltpu
import numpy as np

# ---- module hyper-parameters (VGGBlock(c_in, c_out, Kernels, Stride, leaky, drop, poolK)) ----
C_IN, C_OUT = 4, 8
KSIZE, STRIDE = 3, 1
LEAKY = 0.1
DROP = 0.3            # inference: Dropout is identity
POOLK = 2
EPS = 1e-5            # BatchNorm2d default eps


def _round_up(x, m):
    return (x + m - 1) // m * m


def _vgg_block_kernel(p_ref, w_ref, prm_ref, o_ref):
    # p_ref  : (1, pk*pk, Kd_pad, B_TILE*G) bf16  im2col patches, grouped by pool-window
    #                                             position; batch x pooled-spatial packed
    #                                             on the lane axis; Kd zero-padded to 48
    # w_ref  : (C_OUT, Kd_pad)               bf16 conv weight in (ki, kj, ci) order, padded
    # prm_ref: (C_OUT, 3)                    f32  columns = [conv_bias | bn_scale | bn_shift]
    # o_ref  : (1, C_OUT, B_TILE*G)          f32  pooled output, lane-dense on batch x spatial
    w = w_ref[...]
    bias = prm_ref[:, 0:1]        # (C_OUT, 1) — broadcasts along lanes
    scale = prm_ref[:, 1:2]
    shift = prm_ref[:, 2:3]

    def fused(p):
        # x1 = conv(inputs): (C_OUT, Kd_pad) @ (Kd_pad, B_TILE*G) on the MXU, f32 acc
        x1 = jnp.dot(w, p_ref[0, p], preferred_element_type=jnp.float32) + bias
        # LeakyReLU (single vmax; valid because 0 < LEAKY < 1)
        act = jnp.maximum(x1, LEAKY * x1)
        # com = x1 + BatchNorm(act); BN (eval) folded into scale/shift
        return x1 + act * scale + shift

    # MaxPool2d(poolK): max over the pk*pk pool-window positions, all in-register.
    # (Pool positions kept as a leading block dim — G is not 128-aligned, so a single
    #  wide dot + cross-lane max would force a relayout.)
    res = fused(0)
    for p in range(1, POOLK * POOLK):
        res = jnp.maximum(res, fused(p))
    o_ref[0] = res

    # TODO(synk): Dropout is identity at inference; training-mode dropout and
    # training-mode (batch-statistics) BatchNorm are not implemented.


@jax.jit
def vgg_block_forward(x, conv_w, conv_b, bn_gamma, bn_beta, bn_mean, bn_var):
    """x: (N, C_in, H, W) float32 -> (N, C_out, Hp, Wp) float32 (NCHW, like PyTorch)."""
    N, Cin, H, W = x.shape
    K, S, pk = KSIZE, STRIDE, POOLK
    Ho = (H - K) // S + 1
    Wo = (W - K) // S + 1
    Hp, Wp = Ho // pk, Wo // pk            # MaxPool2d floor behaviour
    G = Hp * Wp
    Kd = Cin * K * K
    Kd_pad = _round_up(Kd, 16)             # bf16 sublane tile

    # Batch blocking: >= 2 "parallel" grid blocks keep both v7x TensorCores busy;
    # on v5e/v6e (1 TC) the grid is just a serial loop, so the extra step is noise.
    num_blocks = 2 if (N >= 2 and N % 2 == 0) else 1
    b_tile = N // num_blocks
    L = b_tile * G                          # lane axis = (batch-in-block, pooled spatial)

    # ---- glue (layout plumbing only): im2col built directly at pooled resolution,
    # grouped by pool-window position, batch folded onto the lane axis.  With
    # allow_input_fusion XLA may fuse this producer into the pallas_call input DMA
    # instead of materializing a separate HBM array.
    x_f = x.astype(jnp.float32)
    slabs = []
    for dh in range(pk):
        for dw in range(pk):
            cols = []
            for ki in range(K):
                for kj in range(K):
                    h0 = dh * S + ki
                    w0 = dw * S + kj
                    sl = x_f[:, :, h0::pk * S, w0::pk * S][:, :, :Hp, :Wp]  # (N,Cin,Hp,Wp)
                    cols.append(sl)
            slab = jnp.stack(cols, axis=1).reshape(N, Kd, G)                 # (N, Kd, G)
            slab = slab.reshape(num_blocks, b_tile, Kd, G)
            slab = slab.transpose(0, 2, 1, 3).reshape(num_blocks, Kd, L)     # (nb, Kd, L)
            slab = jnp.pad(slab, ((0, 0), (0, Kd_pad - Kd), (0, 0)))         # Kd -> Kd_pad
            slabs.append(slab[:, None])                                      # (nb,1,Kd_pad,L)
    patches = jnp.concatenate(slabs, axis=1).astype(jnp.bfloat16)            # (nb,pk*pk,Kd_pad,L)

    # conv weight (C_out, C_in, K, K) -> (C_out, Kd_pad) in (ki, kj, ci) order, bf16 for MXU
    w_mat = jnp.transpose(conv_w, (0, 2, 3, 1)).reshape(C_OUT, Kd)
    w_mat = jnp.pad(w_mat, ((0, 0), (0, Kd_pad - Kd))).astype(jnp.bfloat16)

    # fold BatchNorm (eval) affine + conv bias into a single (C_OUT, 3) operand (f32 tail)
    bn_scale = bn_gamma * lax.rsqrt(bn_var + EPS)
    bn_shift = bn_beta - bn_mean * bn_scale
    params = jnp.stack([conv_b, bn_scale, bn_shift], axis=1).astype(jnp.float32)

    out = pl.pallas_call(
        _vgg_block_kernel,
        out_shape=jax.ShapeDtypeStruct((num_blocks, C_OUT, L), jnp.float32),
        grid_spec=pltpu.PrefetchScalarGridSpec(
            num_scalar_prefetch=0,
            grid=(num_blocks,),
            in_specs=[
                pl.BlockSpec((1, pk * pk, Kd_pad, L), lambda n: (n, 0, 0, 0)),
                pl.BlockSpec((C_OUT, Kd_pad), lambda n: (0, 0)),
                pl.BlockSpec((C_OUT, 3), lambda n: (0, 0)),
            ],
            out_specs=pl.BlockSpec((1, C_OUT, L), lambda n: (n, 0, 0)),
        ),
        compiler_params=pltpu.CompilerParams(
            dimension_semantics=("parallel",),        # batch blocks shard across v7x's 2 TCs
            allow_input_fusion=[True, False, False],  # let the im2col fuse into the input DMA
            vmem_limit_bytes=32 * 1024 * 1024,        # explicit; tiles are tiny (< 0.1 MiB),
                                                      # fits v5e/v6e/v7x (64 MiB physical) alike
        ),
    )(patches, w_mat, params)

    # (nb, C_OUT, b_tile*G) -> (N, C_OUT, Hp, Wp): cheap un-packing of the lane axis.
    out = out.reshape(num_blocks, C_OUT, b_tile, G).transpose(0, 2, 1, 3)
    return out.reshape(N, C_OUT, Hp, Wp)


def vgg_block_reference(x, conv_w, conv_b, bn_gamma, bn_beta, bn_mean, bn_var):
    """Pure-JAX reference mirroring the PyTorch forward (eval-mode BN / dropout).

    Conv operands are cast to bf16 (matching the kernel's MXU input precision,
    ~1e-3 relative error vs f32 PyTorch) with f32 accumulation; the elementwise
    tail is f32, like the kernel."""
    x1 = lax.conv_general_dilated(
        x.astype(jnp.bfloat16), conv_w.astype(jnp.bfloat16),
        window_strides=(STRIDE, STRIDE), padding="VALID",
        dimension_numbers=("NCHW", "OIHW", "NCHW"),
        preferred_element_type=jnp.float32) + conv_b.reshape(1, C_OUT, 1, 1)
    act = jnp.where(x1 > 0, x1, LEAKY * x1)
    scale = (bn_gamma * lax.rsqrt(bn_var + EPS)).reshape(1, C_OUT, 1, 1)
    x2 = (act - bn_mean.reshape(1, C_OUT, 1, 1)) * scale + bn_beta.reshape(1, C_OUT, 1, 1)
    com = x1 + x2
    N, C, Ho, Wo = com.shape
    Hp, Wp = Ho // POOLK, Wo // POOLK
    com = com[:, :, :Hp * POOLK, :Wp * POOLK].reshape(N, C, Hp, POOLK, Wp, POOLK)
    return com.max(axis=(3, 5))


if __name__ == "__main__":
    key = jax.random.PRNGKey(0)
    k = jax.random.split(key, 7)

    x = jax.random.normal(k[0], (2, C_IN, 16, 16), jnp.float32)
    conv_w = 0.1 * jax.random.normal(k[1], (C_OUT, C_IN, KSIZE, KSIZE), jnp.float32)
    conv_b = 0.1 * jax.random.normal(k[2], (C_OUT,), jnp.float32)
    bn_gamma = 1.0 + 0.1 * jax.random.normal(k[3], (C_OUT,), jnp.float32)
    bn_beta = 0.1 * jax.random.normal(k[4], (C_OUT,), jnp.float32)
    bn_mean = 0.1 * jax.random.normal(k[5], (C_OUT,), jnp.float32)
    bn_var = 0.5 + jax.random.uniform(k[6], (C_OUT,), jnp.float32)

    out = vgg_block_forward(x, conv_w, conv_b, bn_gamma, bn_beta, bn_mean, bn_var)
    out = jax.block_until_ready(out)

    ref = vgg_block_reference(x, conv_w, conv_b, bn_gamma, bn_beta, bn_mean, bn_var)
    assert out.shape == ref.shape, (out.shape, ref.shape)
    assert np.allclose(np.asarray(out), np.asarray(ref), rtol=2e-3, atol=2e-3)

    print("KERNEL_OK")
</pallas_src>

<mosaic_0001>
module attributes {stable_mosaic.version = 11 : i64} {
  func.func @_vgg_block_kernel(%arg0: i32, %arg1: memref<1x4x48x49xbf16, #tpu.memory_space<vmem>>, %arg2: memref<8x48xbf16, #tpu.memory_space<vmem>>, %arg3: memref<8x3xf32, #tpu.memory_space<vmem>>, %arg4: memref<1x8x49xf32, #tpu.memory_space<vmem>>) attributes {dimension_semantics = [#tpu.dimension_semantics<parallel>], iteration_bounds = array<i64: 2>, scalar_prefetch = 0 : i64, scratch_operands = 0 : i64, tpu.core_type = #tpu.core_type<tc>, window_params = [{transform_indices = @transform_0, window_bounds = array<i64: 1, 4, 48, 49>}, {pipeline_mode = #tpu.pipeline_mode<synchronous>, transform_indices = @transform_1, window_bounds = array<i64: 8, 48>}, {pipeline_mode = #tpu.pipeline_mode<synchronous>, transform_indices = @transform_2, window_bounds = array<i64: 8, 3>}, {transform_indices = @transform_3, window_bounds = array<i64: 1, 8, 49>}]} {
    %c0 = arith.constant 0 : index
    %c0_0 = arith.constant 0 : index
    %0 = vector.load %arg2[%c0, %c0_0] : memref<8x48xbf16, #tpu.memory_space<vmem>>, vector<8x48xbf16>
    %c0_1 = arith.constant 0 : index
    %c0_2 = arith.constant 0 : index
    %1 = vector.load %arg3[%c0_1, %c0_2] : memref<8x3xf32, #tpu.memory_space<vmem>>, vector<8x1xf32>
    %c0_3 = arith.constant 0 : index
    %c1 = arith.constant 1 : index
    %2 = vector.load %arg3[%c0_3, %c1] : memref<8x3xf32, #tpu.memory_space<vmem>>, vector<8x1xf32>
    %c0_4 = arith.constant 0 : index
    %c2 = arith.constant 2 : index
    %3 = vector.load %arg3[%c0_4, %c2] : memref<8x3xf32, #tpu.memory_space<vmem>>, vector<8x1xf32>
    %c0_5 = arith.constant 0 : index
    %c0_6 = arith.constant 0 : index
    %c0_7 = arith.constant 0 : index
    %c0_8 = arith.constant 0 : index
    %4 = vector.load %arg1[%c0_5, %c0_6, %c0_7, %c0_8] : memref<1x4x48x49xbf16, #tpu.memory_space<vmem>>, vector<1x1x48x49xbf16>
    %5 = vector.shape_cast %4 : vector<1x1x48x49xbf16> to vector<48x49xbf16>
    %cst = arith.constant dense<0.000000e+00> : vector<8x49xf32>
    %6 = tpu.matmul %0, %5, %cst {dimension_numbers = #tpu.dot_dimension_numbers<[1], [0], [0], [1], [0, 0, 1, 1], [], []>} : vector<8x48xbf16>, vector<48x49xbf16>, vector<8x49xf32> -> vector<8x49xf32>
    %7 = vector.broadcast %1 : vector<8x1xf32> to vector<8x49xf32>
    %8 = arith.addf %6, %7 : vector<8x49xf32>
    %cst_9 = arith.constant 1.000000e-01 : f32
    %9 = vector.broadcast %cst_9 : f32 to vector<8x49xf32>
    %10 = arith.mulf %9, %8 : vector<8x49xf32>
    %11 = arith.maximumf %8, %10 : vector<8x49xf32>
    %12 = vector.broadcast %2 : vector<8x1xf32> to vector<8x49xf32>
    %13 = arith.mulf %11, %12 : vector<8x49xf32>
    %14 = arith.addf %8, %13 : vector<8x49xf32>
    %15 = vector.broadcast %3 : vector<8x1xf32> to vector<8x49xf32>
    %16 = arith.addf %14, %15 : vector<8x49xf32>
    %c0_10 = arith.constant 0 : index
    %c1_11 = arith.constant 1 : index
    %c0_12 = arith.constant 0 : index
    %c0_13 = arith.constant 0 : index
    %17 = vector.load %arg1[%c0_10, %c1_11, %c0_12, %c0_13] : memref<1x4x48x49xbf16, #tpu.memory_space<vmem>>, vector<1x1x48x49xbf16>
    %18 = vector.shape_cast %17 : vector<1x1x48x49xbf16> to vector<48x49xbf16>
    %cst_14 = arith.constant dense<0.000000e+00> : vector<8x49xf32>
    %19 = tpu.matmul %0, %18, %cst_14 {dimension_numbers = #tpu.dot_dimension_numbers<[1], [0], [0], [1], [0, 0, 1, 1], [], []>} : vector<8x48xbf16>, vector<48x49xbf16>, vector<8x49xf32> -> vector<8x49xf32>
    %20 = vector.broadcast %1 : vector<8x1xf32> to vector<8x49xf32>
    %21 = arith.addf %19, %20 : vector<8x49xf32>
    %cst_15 = arith.constant 1.000000e-01 : f32
    %22 = vector.broadcast %cst_15 : f32 to vector<8x49xf32>
    %23 = arith.mulf %22, %21 : vector<8x49xf32>
    %24 = arith.maximumf %21, %23 : vector<8x49xf32>
    %25 = vector.broadcast %2 : vector<8x1xf32> to vector<8x49xf32>
    %26 = arith.mulf %24, %25 : vector<8x49xf32>
    %27 = arith.addf %21, %26 : vector<8x49xf32>
    %28 = vector.broadcast %3 : vector<8x1xf32> to vector<8x49xf32>
    %29 = arith.addf %27, %28 : vector<8x49xf32>
    %30 = arith.maximumf %16, %29 : vector<8x49xf32>
    %c0_16 = arith.constant 0 : index
    %c2_17 = arith.constant 2 : index
    %c0_18 = arith.constant 0 : index
    %c0_19 = arith.constant 0 : index
    %31 = vector.load %arg1[%c0_16, %c2_17, %c0_18, %c0_19] : memref<1x4x48x49xbf16, #tpu.memory_space<vmem>>, vector<1x1x48x49xbf16>
    %32 = vector.shape_cast %31 : vector<1x1x48x49xbf16> to vector<48x49xbf16>
    %cst_20 = arith.constant dense<0.000000e+00> : vector<8x49xf32>
    %33 = tpu.matmul %0, %32, %cst_20 {dimension_numbers = #tpu.dot_dimension_numbers<[1], [0], [0], [1], [0, 0, 1, 1], [], []>} : vector<8x48xbf16>, vector<48x49xbf16>, vector<8x49xf32> -> vector<8x49xf32>
    %34 = vector.broadcast %1 : vector<8x1xf32> to vector<8x49xf32>
    %35 = arith.addf %33, %34 : vector<8x49xf32>
    %cst_21 = arith.constant 1.000000e-01 : f32
    %36 = vector.broadcast %cst_21 : f32 to vector<8x49xf32>
    %37 = arith.mulf %36, %35 : vector<8x49xf32>
    %38 = arith.maximumf %35, %37 : vector<8x49xf32>
    %39 = vector.broadcast %2 : vector<8x1xf32> to vector<8x49xf32>
    %40 = arith.mulf %38, %39 : vector<8x49xf32>
    %41 = arith.addf %35, %40 : vector<8x49xf32>
    %42 = vector.broadcast %3 : vector<8x1xf32> to vector<8x49xf32>
    %43 = arith.addf %41, %42 : vector<8x49xf32>
    %44 = arith.maximumf %30, %43 : vector<8x49xf32>
    %c0_22 = arith.constant 0 : index
    %c3 = arith.constant 3 : index
    %c0_23 = arith.constant 0 : index
    %c0_24 = arith.constant 0 : index
    %45 = vector.load %arg1[%c0_22, %c3, %c0_23, %c0_24] : memref<1x4x48x49xbf16, #tpu.memory_space<vmem>>, vector<1x1x48x49xbf16>
    %46 = vector.shape_cast %45 : vector<1x1x48x49xbf16> to vector<48x49xbf16>
    %cst_25 = arith.constant dense<0.000000e+00> : vector<8x49xf32>
    %47 = tpu.matmul %0, %46, %cst_25 {dimension_numbers = #tpu.dot_dimension_numbers<[1], [0], [0], [1], [0, 0, 1, 1], [], []>} : vector<8x48xbf16>, vector<48x49xbf16>, vector<8x49xf32> -> vector<8x49xf32>
    %48 = vector.broadcast %1 : vector<8x1xf32> to vector<8x49xf32>
    %49 = arith.addf %47, %48 : vector<8x49xf32>
    %cst_26 = arith.constant 1.000000e-01 : f32
    %50 = vector.broadcast %cst_26 : f32 to vector<8x49xf32>
    %51 = arith.mulf %50, %49 : vector<8x49xf32>
    %52 = arith.maximumf %49, %51 : vector<8x49xf32>
    %53 = vector.broadcast %2 : vector<8x1xf32> to vector<8x49xf32>
    %54 = arith.mulf %52, %53 : vector<8x49xf32>
    %55 = arith.addf %49, %54 : vector<8x49xf32>
    %56 = vector.broadcast %3 : vector<8x1xf32> to vector<8x49xf32>
    %57 = arith.addf %55, %56 : vector<8x49xf32>
    %58 = arith.maximumf %44, %57 : vector<8x49xf32>
    %c0_27 = arith.constant 0 : index
    %c0_28 = arith.constant 0 : index
    %c0_29 = arith.constant 0 : index
    %59 = vector.load %arg4[%c0_27, %c0_28, %c0_29] : memref<1x8x49xf32, #tpu.memory_space<vmem>>, vector<1x8x49xf32>
    %60 = vector.shape_cast %59 : vector<1x8x49xf32> to vector<8x49xf32>
    %61 = vector.shape_cast %58 : vector<8x49xf32> to vector<1x8x49xf32>
    tpu.vector_store %arg4[%c0_27, %c0_28, %c0_29], %61 {strides = array<i32>} : memref<1x8x49xf32, #tpu.memory_space<vmem>>, vector<1x8x49xf32>,
    return
  }
  func.func @transform_0(%arg0: i32) -> (i32, i32, i32, i32) {
    %c0_i32 = arith.constant 0 : i32
    %c0_i32_0 = arith.constant 0 : i32
    %c0_i32_1 = arith.constant 0 : i32
    %c0_i32_2 = arith.constant 0 : i32
    return %arg0, %c0_i32, %c0_i32_0, %c0_i32_1 : i32, i32, i32, i32
  }
  func.func @transform_1(%arg0: i32) -> (i32, i32) {
    %c0_i32 = arith.constant 0 : i32
    %c0_i32_0 = arith.constant 0 : i32
    %c0_i32_1 = arith.constant 0 : i32
    return %c0_i32, %c0_i32_0 : i32, i32
  }
  func.func @transform_2(%arg0: i32) -> (i32, i32) {
    %c0_i32 = arith.constant 0 : i32
    %c0_i32_0 = arith.constant 0 : i32
    %c0_i32_1 = arith.constant 0 : i32
    return %c0_i32, %c0_i32_0 : i32, i32
  }
  func.func @transform_3(%arg0: i32) -> (i32, i32, i32) {
    %c0_i32 = arith.constant 0 : i32
    %c0_i32_0 = arith.constant 0 : i32
    %c0_i32_1 = arith.constant 0 : i32
    return %arg0, %c0_i32, %c0_i32_0 : i32, i32, i32
  }
}

</mosaic_0001>

<llo_original>
// kernel: vgg_block_forward.2
$region0: #{vgg_block_forward.2}
  #allocation0 [shape = 'u32[]', space=smem, size = 0x4, offset = 0x4, fixed_abs, tag = 'smem constant byte address 0x4 - core index']
  #allocation1 [shape = 'u32[144,128]{1,0:T(1,128)}', space=vmem, size = 0x12000, scoped, tag = 'internal scratch']
  #allocation2 [shape = 'u32[2048]{0}', space=vmem, size = 0x2000, scoped, tag = 'scoped memory for vgg_block_forward.2']
  #allocation3 [shape = 'u32[2048]{0}', space=vmem, size = 0x2000, scoped, tag = 'scoped memory for vgg_block_forward.2']
  #allocation4 [shape = 'u32[2048]{0}', space=vmem, size = 0x2000, scoped, tag = 'scoped memory for vgg_block_forward.2']
  #allocation5 [shape = 'u32[2048]{0}', space=vmem, size = 0x2000, scoped, tag = 'scoped memory for vgg_block_forward.2']
  #allocation6 [shape = 'u32[2048]{0}', space=vmem, size = 0x2000, scoped, tag = 'scoped memory for vgg_block_forward.2']
  #allocation7 [shape = 'u32[2048]{0}', space=vmem, size = 0x2000, scoped, tag = 'scoped memory for vgg_block_forward.2']
  #allocation8 [shape = 'u32[2048]{0}', space=vmem, size = 0x2000, scoped, tag = 'scoped memory for vgg_block_forward.2']
  #allocation9 [shape = 'u32[2048]{0}', space=vmem, size = 0x2000, scoped, tag = 'scoped memory for vgg_block_forward.2']
  #allocation10 [shape = 'u32[2048]{0}', space=vmem, size = 0x2000, scoped, tag = 'scoped memory for vgg_block_forward.2']
  #allocation11 [shape = 'u32[2048]{0}', space=vmem, size = 0x2000, scoped, tag = 'scoped memory for vgg_block_forward.2']
  #allocation12 [shape = 'u32[2048]{0}', space=vmem, size = 0x2000, scoped, tag = 'scoped memory for vgg_block_forward.2']
  #allocation13 [shape = 'u32[2048]{0}', space=vmem, size = 0x2000, scoped, tag = 'scoped memory for vgg_block_forward.2']
  #allocation14 [shape = 'u32[2048]{0}', space=vmem, size = 0x2000, scoped, tag = 'scoped memory for vgg_block_forward.2']
  #allocation15 [shape = 'u32[2048]{0}', space=vmem, size = 0x2000, scoped, tag = 'scoped memory for vgg_block_forward.2']
  #allocation16 [shape = 'u32[2048]{0}', space=vmem, size = 0x2000, scoped, tag = 'scoped memory for vgg_block_forward.2']
  #allocation17 [shape = 'u32[2048]{0}', space=vmem, size = 0x2000, scoped, tag = 'scoped memory for vgg_block_forward.2']
  #allocation18 [shape = 'u32[2048]{0}', space=vmem, size = 0x2000, scoped, tag = 'scoped memory for vgg_block_forward.2']
  #allocation19 [shape = 'u32[2048]{0}', space=vmem, size = 0x2000, scoped, tag = 'scoped memory for vgg_block_forward.2']
  #allocation20 [shape = 'u32[2048]{0}', space=vmem, size = 0x2000, scoped, tag = 'scoped memory for vgg_block_forward.2']
  #allocation21 [shape = 'u32[2048]{0}', space=vmem, size = 0x2000, scoped, tag = 'scoped memory for vgg_block_forward.2']
  %s0 = inlined_call_operand.vmem [shape: bf16[8,48], index: 0, kind: input, shape index: {}]
  %s1 = inlined_call_operand.vmem [shape: f32[8,3], index: 1, kind: input, shape index: {}]
  %s2 = inlined_call_operand.vmem [shape: bf16[2,1,48,49], index: 2, kind: input, shape index: {}]
  %s3 = inlined_call_operand.<no memory space> [shape: bf16[], index: 3, kind: input, shape index: {}]
  %s4 = inlined_call_operand.vmem [shape: bf16[2,1,48,49], index: 4, kind: input, shape index: {}]
  %s5 = inlined_call_operand.vmem [shape: bf16[2,1,48,49], index: 5, kind: input, shape index: {}]
  %s6 = inlined_call_operand.vmem [shape: bf16[2,1,48,49], index: 6, kind: input, shape index: {}]
  %s7 = inlined_call_operand.vmem [shape: f32[2,8,49], index: 7, kind: output, shape index: {}]
  %s8 = sld [smem:[#allocation0]]
  $region57: #{vgg_block_forward.2} parent=0
    _
  %s10 = ssub.s32 1, %s8
  %s11 = scalar_select 0, %s10, %s8
  %v12 = vstv %s3
  %v13 = vunpack.i.l.bf16 %v12
  %v15 = vunpack.i.h.bf16 %v12
  %v17 = vstv %s3
  %v18 = vunpack.i.l.bf16 %v17
  %v20 = vunpack.i.h.bf16 %v17
  %v22 = vstv %s3
  %v23 = vunpack.i.l.bf16 %v22
  %v25 = vunpack.i.h.bf16 %v22
  %v27 = vstv %s3
  %v28 = vunpack.i.l.bf16 %v27
  %v30 = vunpack.i.h.bf16 %v27
  loop: start=0, step=1, limit=4
  $region2: #{vgg_block_forward.2} parent=0 // loop_pre_header
    _
  $region3: #{vgg_block_forward.2} parent=0 // loop_header
    %s33 = sphi 0, %s37
    %p34 = scmp.ge.s32.totalorder %s33, 4
    %s47 = sphi 0, %s49
    %s50 = sphi 0, %s47
    %s51 = sphi 0, %s50
    %s67 = sphi 0, %s51
    %s77 = sphi 0, %s79
    %s80 = sphi 0, %s77
    %s81 = sphi 0, %s80
    %s97 = sphi 0, %s81
    %s107 = sphi 0, %s109
    %s110 = sphi 0, %s107
    %s111 = sphi 0, %s110
    %s127 = sphi 0, %s111
    %s133 = sphi 0, %s135
    %s136 = sphi 0, %s133
    %s137 = sphi 0, %s136
    %s153 = sphi 0, %s137
    %s157 = sphi 0, %s157
    %s159 = sphi 0, %s157
    %s160 = sphi 0, %s159
    %s174 = sphi 0, %s160
    %s178 = sphi 0, %s178
    %s180 = sphi 0, %s178
    %s181 = sphi 0, %s180
    %s195 = sphi 0, %s181
    %s201 = sphi 0, %s203
    %s204 = sphi 0, %s201
    %s205 = sphi 0, %s204
    %s221 = sphi 0, %s205
  $region4: #{vgg_block_forward.2} parent=0 // loop_header_branch
    %36 = sbr.rel (%p34) target = $region8
  $region5: #{vgg_block_forward.2} parent=0 // loop_body
    %s38 = ssub.s32 %s33, 1
    %s39 = ssub.s32 %s33, 2
    %s40 = sadd.s32 %s33, 1
    %s43 = ssub.s32 %s33, %s40
    %s44 = ssub.s32 0, 0
    %s45 = sor.u32 %s43, %s44
    %p46 = scmp.eq.s32.totalorder %s45, 0
    %s48 = sadd.s32 %s47, 1
    %s49 = scalar_select %p46, %s47, %s48
    %p52 = pneg %p46
    %p53 = scmp.eq.s32.totalorder %s33, 1
    %p54 = por %p52, %p53
    %p55 = scmp.ne.s32.totalorder %s47, %s50
    %p56 = scmp.eq.s32.totalorder %s33, 0
    %p57 = por %p55, %p56
    %p58 = scmp.ne.s32.totalorder %s47, %s50
    %p59 = scmp.eq.s32.totalorder %s38, 1
    %p60 = por %p58, %p59
    %p61 = scmp.ne.s32.totalorder %s50, %s51
    %p62 = scmp.eq.s32.totalorder %s38, 0
    %p63 = por %p61, %p62
    %p64 = scmp.ne.s32.totalorder %s50, %s51
    %p65 = scmp.eq.s32.totalorder %s39, 1
    %p66 = por %p64, %p65
    %p68 = scmp.ne.s32.totalorder %s51, %s67
    %p69 = scmp.eq.s32.totalorder %s39, 0
    %p70 = por %p68, %p69
    %s73 = ssub.s32 %s33, %s40
    %s74 = ssub.s32 0, 0
    %s75 = sor.u32 %s73, %s74
    %p76 = scmp.eq.s32.totalorder %s75, 0
    %s78 = sadd.s32 %s77, 1
    %s79 = scalar_select %p76, %s77, %s78
    %p82 = pneg %p76
    %p83 = scmp.eq.s32.totalorder %s33, 1
    %p84 = por %p82, %p83
    %p85 = scmp.ne.s32.totalorder %s77, %s80
    %p86 = scmp.eq.s32.totalorder %s33, 0
    %p87 = por %p85, %p86
    %p88 = scmp.ne.s32.totalorder %s77, %s80
    %p89 = scmp.eq.s32.totalorder %s38, 1
    %p90 = por %p88, %p89
    %p91 = scmp.ne.s32.totalorder %s80, %s81
    %p92 = scmp.eq.s32.totalorder %s38, 0
    %p93 = por %p91, %p92
    %p94 = scmp.ne.s32.totalorder %s80, %s81
    %p95 = scmp.eq.s32.totalorder %s39, 1
    %p96 = por %p94, %p95
    %p98 = scmp.ne.s32.totalorder %s81, %s97
    %p99 = scmp.eq.s32.totalorder %s39, 0
    %p100 = por %p98, %p99
    %s103 = ssub.s32 %s33, %s40
    %s104 = ssub.s32 0, 0
    %s105 = sor.u32 %s103, %s104
    %p106 = scmp.eq.s32.totalorder %s105, 0
    %s108 = sadd.s32 %s107, 1
    %s109 = scalar_select %p106, %s107, %s108
    %p112 = pneg %p106
    %p113 = scmp.eq.s32.totalorder %s33, 1
    %p114 = por %p112, %p113
    %p115 = scmp.ne.s32.totalorder %s107, %s110
    %p116 = scmp.eq.s32.totalorder %s33, 0
    %p117 = por %p115, %p116
    %p118 = scmp.ne.s32.totalorder %s107, %s110
    %p119 = scmp.eq.s32.totalorder %s38, 1
    %p120 = por %p118, %p119
    %p121 = scmp.ne.s32.totalorder %s110, %s111
    %p122 = scmp.eq.s32.totalorder %s38, 0
    %p123 = por %p121, %p122
    %p124 = scmp.ne.s32.totalorder %s110, %s111
    %p125 = scmp.eq.s32.totalorder %s39, 1
    %p126 = por %p124, %p125
    %p128 = scmp.ne.s32.totalorder %s111, %s127
    %p129 = scmp.eq.s32.totalorder %s39, 0
    %p130 = por %p128, %p129
    %s131 = ssub.s32 %s33, %s40
    %p132 = scmp.eq.s32.totalorder %s131, 0
    %s134 = sadd.s32 %s133, 1
    %s135 = scalar_select %p132, %s133, %s134
    %p138 = pneg %p132
    %p139 = scmp.eq.s32.totalorder %s33, 1
    %p140 = por %p138, %p139
    %p141 = scmp.ne.s32.totalorder %s133, %s136
    %p142 = scmp.eq.s32.totalorder %s33, 0
    %p143 = por %p141, %p142
    %p144 = scmp.ne.s32.totalorder %s133, %s136
    %p145 = scmp.eq.s32.totalorder %s38, 1
    %p146 = por %p144, %p145
    %p147 = scmp.ne.s32.totalorder %s136, %s137
    %p148 = scmp.eq.s32.totalorder %s38, 0
    %p149 = por %p147, %p148
    %p150 = scmp.ne.s32.totalorder %s136, %s137
    %p151 = scmp.eq.s32.totalorder %s39, 1
    %p152 = por %p150, %p151
    %p154 = scmp.ne.s32.totalorder %s137, %s153
    %p155 = scmp.eq.s32.totalorder %s39, 0
    %p156 = por %p154, %p155
    %s158 = sadd.s32 %s157, 1
    %p161 = scmp.eq.s32.totalorder %s33, 1
    %p162 = scmp.ne.s32.totalorder %s157, %s159
    %p163 = scmp.eq.s32.totalorder %s33, 0
    %p164 = por %p162, %p163
    %p165 = scmp.ne.s32.totalorder %s157, %s159
    %p166 = scmp.eq.s32.totalorder %s38, 1
    %p167 = por %p165, %p166
    %p168 = scmp.ne.s32.totalorder %s159, %s160
    %p169 = scmp.eq.s32.totalorder %s38, 0
    %p170 = por %p168, %p169
    %p171 = scmp.ne.s32.totalorder %s159, %s160
    %p172 = scmp.eq.s32.totalorder %s39, 1
    %p173 = por %p171, %p172
    %p175 = scmp.ne.s32.totalorder %s160, %s174
    %p176 = scmp.eq.s32.totalorder %s39, 0
    %p177 = por %p175, %p176
    %s179 = sadd.s32 %s178, 1
    %p182 = scmp.eq.s32.totalorder %s33, 1
    %p183 = scmp.ne.s32.totalorder %s178, %s180
    %p184 = scmp.eq.s32.totalorder %s33, 0
    %p185 = por %p183, %p184
    %p186 = scmp.ne.s32.totalorder %s178, %s180
    %p187 = scmp.eq.s32.totalorder %s38, 1
    %p188 = por %p186, %p187
    %p189 = scmp.ne.s32.totalorder %s180, %s181
    %p190 = scmp.eq.s32.totalorder %s38, 0
    %p191 = por %p189, %p190
    %p192 = scmp.ne.s32.totalorder %s180, %s181
    %p193 = scmp.eq.s32.totalorder %s39, 1
    %p194 = por %p192, %p193
    %p196 = scmp.ne.s32.totalorder %s181, %s195
    %p197 = scmp.eq.s32.totalorder %s39, 0
    %p198 = por %p196, %p197
    %s199 = ssub.s32 %s33, %s40
    %p200 = scmp.eq.s32.totalorder %s199, 0
    %s202 = sadd.s32 %s201, 1
    %s203 = scalar_select %p200, %s201, %s202
    %p206 = pneg %p200
    %p207 = scmp.eq.s32.totalorder %s33, 1
    %p208 = por %p206, %p207
    %p209 = scmp.ne.s32.totalorder %s201, %s204
    %p210 = scmp.eq.s32.totalorder %s33, 0
    %p211 = por %p209, %p210
    %p212 = scmp.ne.s32.totalorder %s201, %s204
    %p213 = scmp.eq.s32.totalorder %s38, 1
    %p214 = por %p212, %p213
    %p215 = scmp.ne.s32.totalorder %s204, %s205
    %p216 = scmp.eq.s32.totalorder %s38, 0
    %p217 = por %p215, %p216
    %p218 = scmp.ne.s32.totalorder %s204, %s205
    %p219 = scmp.eq.s32.totalorder %s39, 1
    %p220 = por %p218, %p219
    %p222 = scmp.ne.s32.totalorder %s205, %s221
    %p223 = scmp.eq.s32.totalorder %s39, 0
    %p224 = por %p222, %p223
    %p225 = scmp.le.s32.totalorder 1, %s33
    %p226 = scmp.lt.s32.totalorder %s33, 3
    %p227 = pnand %p225, %p226
    %p228 = pneg %p227
    // Predicated region
    $region9: #{vgg_block_forward.2} parent=5 // pred_check
      _
    $region10: #{vgg_block_forward.2} parent=5 // pred_check_branch
      %230 = sbr.rel (%p227) target = $region12
    $region11: #{vgg_block_forward.2} parent=5 // pred_region
      %s231 = ssub.s32 %s33, 1
      // Predicated region
      $region13: #{vgg_block_forward.2} parent=11 // pred_check
        %p232 = pneg %p170
      $region14: #{vgg_block_forward.2} parent=11 // pred_check_branch
        %234 = sbr.rel (%p232) target = $region16
      $region15: #{vgg_block_forward.2} parent=11 // pred_region
        _
      $region16: #{vgg_block_forward.2} parent=11 // pred_fallthru
        _
      // Predicated region
      $region17: #{vgg_block_forward.2} parent=11 // pred_check
        %p235 = pneg %p191
      $region18: #{vgg_block_forward.2} parent=11 // pred_check_branch
        %237 = sbr.rel (%p235) target = $region20
      $region19: #{vgg_block_forward.2} parent=11 // pred_region
        _
      $region20: #{vgg_block_forward.2} parent=11 // pred_fallthru
        _
    $region12: #{vgg_block_forward.2} parent=5 // pred_fallthru
      _
    %p238 = scmp.lt.s32.totalorder %s33, 2
    // Predicated region
    $region21: #{vgg_block_forward.2} parent=5 // pred_check
      %p239 = pneg %p238
    $region22: #{vgg_block_forward.2} parent=5 // pred_check_branch
      %241 = sbr.rel (%p239) target = $region24
    $region23: #{vgg_block_forward.2} parent=5 // pred_region
      // Predicated region
      $region25: #{vgg_block_forward.2} parent=23 // pred_check
        %p242 = pneg %p57
      $region26: #{vgg_block_forward.2} parent=23 // pred_check_branch
        %244 = sbr.rel (%p242) target = $region28
      $region27: #{vgg_block_forward.2} parent=23 // pred_region
        %s246 = ssub.s32 1, 0
        %s247 = smul.u32 64, %s246
        %s248 = smul.u32 %s247, 6
        %p249 = scmp.lt.s32.totalorder %s33, 1
        %s250 = scalar_select %p249, %s33, 1
        %p251 = scmp.lt.s32.totalorder 0, 0
        %s252 = scalar_select %p251, 0, 0
        %s253 = smul.addr %s252, 6
        %s254 = smul.addr %s250, 6
        %s255 = sadd.s32 %s253, %s254
        %s256 = smul.addr %s255, 4
        %s257 = scalar_lea.vmem %s2, %s256
        %s259 = ssub.s32 1, 0
        %s260 = smul.u32 64, %s259
        %s261 = smul.u32 %s260, 6
      $region28: #{vgg_block_forward.2} parent=23 // pred_fallthru
        _
      // Predicated region
      $region29: #{vgg_block_forward.2} parent=23 // pred_check
        %p262 = pneg %p87
      $region30: #{vgg_block_forward.2} parent=23 // pred_check_branch
        %264 = sbr.rel (%p262) target = $region32
      $region31: #{vgg_block_forward.2} parent=23 // pred_region
        %s266 = ssub.s32 1, 0
        %s267 = smul.u32 64, %s266
        %s268 = smul.u32 %s267, 6
        %p269 = scmp.lt.s32.totalorder %s33, 1
        %s270 = scalar_select %p269, %s33, 1
        %p271 = scmp.lt.s32.totalorder 0, 0
        %s272 = scalar_select %p271, 0, 0
        %s273 = smul.addr %s272, 6
        %s274 = smul.addr %s270, 6
        %s275 = sadd.s32 %s273, %s274
        %s276 = smul.addr %s275, 4
        %s277 = scalar_lea.vmem %s4, %s276
        %s279 = ssub.s32 1, 0
        %s280 = smul.u32 64, %s279
        %s281 = smul.u32 %s280, 6
      $region32: #{vgg_block_forward.2} parent=23 // pred_fallthru
        _
      // Predicated region
      $region33: #{vgg_block_forward.2} parent=23 // pred_check
        %p282 = pneg %p117
      $region34: #{vgg_block_forward.2} parent=23 // pred_check_branch
        %284 = sbr.rel (%p282) target = $region36
      $region35: #{vgg_block_forward.2} parent=23 // pred_region
        %s286 = ssub.s32 1, 0
        %s287 = smul.u32 64, %s286
        %s288 = smul.u32 %s287, 6
        %p289 = scmp.lt.s32.totalorder %s33, 1
        %s290 = scalar_select %p289, %s33, 1
        %p291 = scmp.lt.s32.totalorder 0, 0
        %s292 = scalar_select %p291, 0, 0
        %s293 = smul.addr %s292, 6
        %s294 = smul.addr %s290, 6
        %s295 = sadd.s32 %s293, %s294
        %s296 = smul.addr %s295, 4
        %s297 = scalar_lea.vmem %s5, %s296
        %s299 = ssub.s32 1, 0
        %s300 = smul.u32 64, %s299
        %s301 = smul.u32 %s300, 6
      $region36: #{vgg_block_forward.2} parent=23 // pred_fallthru
        _
      // Predicated region
      $region37: #{vgg_block_forward.2} parent=23 // pred_check
        %p302 = pneg %p143
      $region38: #{vgg_block_forward.2} parent=23 // pred_check_branch
        %304 = sbr.rel (%p302) target = $region40
      $region39: #{vgg_block_forward.2} parent=23 // pred_region
        %p305 = scmp.lt.s32.totalorder %s33, 1
        %s306 = scalar_select %p305, %s33, 1
        %s307 = smul.addr %s306, 6
        %s308 = smul.addr %s307, 4
        %s309 = scalar_lea.vmem %s6, %s308
      $region40: #{vgg_block_forward.2} parent=23 // pred_fallthru
        _
    $region24: #{vgg_block_forward.2} parent=5 // pred_fallthru
      _
    %p310 = scmp.le.s32.totalorder 1, %s33
    %p311 = scmp.lt.s32.totalorder %s33, 3
    %p312 = pnand %p310, %p311
    %p313 = pneg %p312
    // Predicated region
    $region41: #{vgg_block_forward.2} parent=5 // pred_check
      _
    $region42: #{vgg_block_forward.2} parent=5 // pred_check_branch
      %315 = sbr.rel (%p312) target = $region44
    $region43: #{vgg_block_forward.2} parent=5 // pred_region
      #allocation22 [shape = 'u8[49152]{0}', space=vmem, size = 0xc000, dematerialized = true, scoped, tag = 'FusionAdapter Buffer %fusion.1 = bf16[2,4,48,49]{3,2,1,0:T(8,128)(2,1)} fusion(%param_2.3, %param_3.2, %param_4.2, %param_5.3, %param_6.2), kind=kLoop, calls=%fused_computation.1.clone, metadata={op_name="jit(vgg_block_forward)/concatenate" stack_frame_id=11}']
      %s316 = ssub.s32 %s33, 1
      %s318 = ssub.s32 1, 0
      %s319 = smul.u32 64, %s318
      %s320 = smul.u32 %s319, 6
      %p321 = scmp.lt.s32.totalorder %s38, 1
      %s322 = scalar_select %p321, %s38, 1
      %p323 = scmp.lt.s32.totalorder 0, 0
      %s324 = scalar_select %p323, 0, 0
      %s325 = smul.addr %s324, 6
      %s326 = smul.addr %s322, 6
      %s327 = sadd.s32 %s325, %s326
      %s328 = smul.addr %s327, 4
      %s329 = scalar_lea.vmem %s2, %s328
      %p330 = pneg %p63
      %p331 = pneg %p60
      %s333 = ssub.s32 1, 0
      %s334 = smul.u32 64, %s333
      %s335 = smul.u32 %s334, 6
      %p336 = scmp.lt.s32.totalorder %s38, 1
      %s337 = scalar_select %p336, %s38, 1
      %p338 = scmp.lt.s32.totalorder 0, 0
      %s339 = scalar_select %p338, 0, 0
      %s340 = smul.addr %s339, 6
      %s341 = smul.addr %s337, 6
      %s342 = sadd.s32 %s340, %s341
      %s343 = smul.addr %s342, 4
      %s344 = scalar_lea.vmem %s4, %s343
      %p345 = pneg %p93
      %p346 = pneg %p90
      %s348 = ssub.s32 1, 0
      %s349 = smul.u32 64, %s348
      %s350 = smul.u32 %s349, 6
      %p351 = scmp.lt.s32.totalorder %s38, 1
      %s352 = scalar_select %p351, %s38, 1
      %p353 = scmp.lt.s32.totalorder 0, 0
      %s354 = scalar_select %p353, 0, 0
      %s355 = smul.addr %s354, 6
      %s356 = smul.addr %s352, 6
      %s357 = sadd.s32 %s355, %s356
      %s358 = smul.addr %s357, 4
      %s359 = scalar_lea.vmem %s5, %s358
      %p360 = pneg %p123
      %p361 = pneg %p120
      %p362 = scmp.lt.s32.totalorder %s38, 1
      %s363 = scalar_select %p362, %s38, 1
      %s364 = smul.addr %s363, 6
      %s365 = smul.addr %s364, 4
      %s366 = scalar_lea.vmem %s6, %s365
      %p367 = pneg %p149
      %p368 = pneg %p146
      %p369 = pneg %p170
      %p370 = pneg %p167
      %p371 = pneg %p191
      %p372 = pneg %p188
      %p373 = pneg %p217
      %p374 = pneg %p214
      %p375 = scmp.lt.s32.totalorder %s38, 1
      %s376 = scalar_select %p375, %s38, 1
      %s377 = smul.addr %s376, 8
      %s378 = scalar_lea.vmem %s7, %s377
      %s380 = ssub.s32 1, 0
      %s381 = smul.u32 64, %s380
      %s382 = smul.u32 %s381, 6
      %p383 = scmp.lt.s32.totalorder %s38, 1
      %s384 = scalar_select %p383, %s38, 1
      %p385 = scmp.lt.s32.totalorder 0, 0
      %s386 = scalar_select %p385, 0, 0
      %s387 = smul.addr %s386, 6
      %s388 = smul.addr %s384, 6
      %s389 = sadd.s32 %s387, %s388
      %s390 = smul.addr %s389, 4
      %s391 = scalar_lea.vmem %s2, %s390
      %s393 = ssub.s32 1, 0
      %s394 = smul.u32 64, %s393
      %s395 = smul.u32 %s394, 6
      %s397 = ssub.s32 1, 0
      %s398 = smul.u32 64, %s397
      %s399 = smul.u32 %s398, 6
      %p400 = scmp.lt.s32.totalorder %s38, 1
      %s401 = scalar_select %p400, %s38, 1
      %p402 = scmp.lt.s32.totalorder 0, 0
      %s403 = scalar_select %p402, 0, 0
      %s404 = smul.addr %s403, 6
      %s405 = smul.addr %s401, 6
      %s406 = sadd.s32 %s404, %s405
      %s407 = smul.addr %s406, 4
      %s408 = scalar_lea.vmem %s4, %s407
      %s410 = ssub.s32 1, 0
      %s411 = smul.u32 64, %s410
      %s412 = smul.u32 %s411, 6
      %s414 = ssub.s32 1, 0
      %s415 = smul.u32 64, %s414
      %s416 = smul.u32 %s415, 6
      %p417 = scmp.lt.s32.totalorder %s38, 1
      %s418 = scalar_select %p417, %s38, 1
      %p419 = scmp.lt.s32.totalorder 0, 0
      %s420 = scalar_select %p419, 0, 0
      %s421 = smul.addr %s420, 6
      %s422 = smul.addr %s418, 6
      %s423 = sadd.s32 %s421, %s422
      %s424 = smul.addr %s423, 4
      %s425 = scalar_lea.vmem %s5, %s424
      %s427 = ssub.s32 1, 0
      %s428 = smul.u32 64, %s427
      %s429 = smul.u32 %s428, 6
      %p430 = scmp.lt.s32.totalorder %s38, 1
      %s431 = scalar_select %p430, %s38, 1
      %s432 = smul.addr %s431, 6
      %s433 = smul.addr %s432, 4
      %s434 = scalar_lea.vmem %s6, %s433
      %p435 = scmp.lt.s32.totalorder %s38, 1
      %s436 = scalar_select %p435, %s38, 1
      %s437 = smul.addr %s436, 8
      %s438 = scalar_lea.vmem %s7, %s437
      %s439 = ssub.s32 0, 0
      %p440 = scmp.lt.s32.totalorder %s439, 0
      %s441 = scalar_select %p440, 0, 255
      %s442 = sshrl.u32 %s441, 1
      %s443 = sor.u32 %s441, %s442
      %s444 = sand.u32 %s443, 85
      %s445 = sshrl.u32 %s444, 1
      %s446 = sor.u32 %s444, %s445
      %s447 = sand.u32 51, %s446
      %s448 = sshrl.u32 %s447, 2
      %s449 = sor.u32 %s447, %s448
      %s450 = sand.u32 15, %s449
      %v451 = vld [vmem:[%s391] sm:%s450]
      %v452 = vunpack.c.l.bf16 %v451
      %v453 = vunpack.c.h.bf16 %v451
      %s454 = ssub.s32 0, 0
      %p455 = scmp.lt.s32.totalorder %s454, 0
      %s456 = scalar_select %p455, 0, 255
      %s457 = sshrl.u32 %s456, 1
      %s458 = sor.u32 %s456, %s457
      %s459 = sand.u32 %s458, 85
      %s460 = sshrl.u32 %s459, 1
      %s461 = sor.u32 %s459, %s460
      %s462 = sand.u32 51, %s461
      %s463 = sshrl.u32 %s462, 2
      %s464 = sor.u32 %s462, %s463
      %s465 = sand.u32 15, %s464
      %v466 = vld [vmem:[%s408] sm:%s465]
      %v467 = vunpack.c.l.bf16 %v466
      %v468 = vunpack.c.h.bf16 %v466
      %s469 = ssub.s32 0, 0
      %p470 = scmp.lt.s32.totalorder %s469, 0
      %s471 = scalar_select %p470, 0, 255
      %s472 = sshrl.u32 %s471, 1
      %s473 = sor.u32 %s471, %s472
      %s474 = sand.u32 %s473, 85
      %s475 = sshrl.u32 %s474, 1
      %s476 = sor.u32 %s474, %s475
      %s477 = sand.u32 51, %s476
      %s478 = sshrl.u32 %s477, 2
      %s479 = sor.u32 %s477, %s478
      %s480 = sand.u32 15, %s479
      %v481 = vld [vmem:[%s425] sm:%s480]
      %v482 = vunpack.c.l.bf16 %v481
      %v483 = vunpack.c.h.bf16 %v481
      %s485 = sor.u32 255, 127
      %s486 = sand.u32 %s485, 85
      %s487 = sshrl.u32 %s486, 1
      %s488 = sor.u32 %s486, %s487
      %s489 = sand.u32 51, %s488
      %s490 = sshrl.u32 %s489, 2
      %s491 = sor.u32 %s489, %s490
      %s492 = sand.u32 15, %s491
      %v493 = vld [vmem:[%s434] sm:%s492]
      %v494 = vunpack.c.l.bf16 %v493
      %v495 = vunpack.c.h.bf16 %v493
      %v496 = vlaneseq
      %v497 = vand.u32 %v496, 127
      %vm499 = vcmp.lt.s32.totalorder %v497, 49
      %v500 = vsel %vm499, %v494, %v28
      %s501 = scalar_lea.vmem %s391, 4
      %s502 = ssub.s32 0, 0
      %p503 = scmp.lt.s32.totalorder %s502, 0
      %s504 = scalar_select %p503, 0, 255
      %s505 = sshrl.u32 %s504, 1
      %s506 = sor.u32 %s504, %s505
      %s507 = sand.u32 %s506, 85
      %s508 = sshrl.u32 %s507, 1
      %s509 = sor.u32 %s507, %s508
      %s510 = sand.u32 51, %s509
      %s511 = sshrl.u32 %s510, 2
      %s512 = sor.u32 %s510, %s511
      %s513 = sand.u32 15, %s512
      %v514 = vld [vmem:[%s501] sm:%s513]
      %v515 = vunpack.c.l.bf16 %v514
      %v516 = vunpack.c.h.bf16 %v514
      %s517 = scalar_lea.vmem %s408, 4
      %s518 = ssub.s32 0, 0
      %p519 = scmp.lt.s32.totalorder %s518, 0
      %s520 = scalar_select %p519, 0, 255
      %s521 = sshrl.u32 %s520, 1
      %s522 = sor.u32 %s520, %s521
      %s523 = sand.u32 %s522, 85
      %s524 = sshrl.u32 %s523, 1
      %s525 = sor.u32 %s523, %s524
      %s526 = sand.u32 51, %s525
      %s527 = sshrl.u32 %s526, 2
      %s528 = sor.u32 %s526, %s527
      %s529 = sand.u32 15, %s528
      %v530 = vld [vmem:[%s517] sm:%s529]
      %v531 = vunpack.c.l.bf16 %v530
      %v532 = vunpack.c.h.bf16 %v530
      %s533 = scalar_lea.vmem %s425, 4
      %s534 = ssub.s32 0, 0
      %p535 = scmp.lt.s32.totalorder %s534, 0
      %s536 = scalar_select %p535, 0, 255
      %s537 = sshrl.u32 %s536, 1
      %s538 = sor.u32 %s536, %s537
      %s539 = sand.u32 %s538, 85
      %s540 = sshrl.u32 %s539, 1
      %s541 = sor.u32 %s539, %s540
      %s542 = sand.u32 51, %s541
      %s543 = sshrl.u32 %s542, 2
      %s544 = sor.u32 %s542, %s543
      %s545 = sand.u32 15, %s544
      %v546 = vld [vmem:[%s533] sm:%s545]
      %v547 = vunpack.c.l.bf16 %v546
      %v548 = vunpack.c.h.bf16 %v546
      %s549 = scalar_lea.vmem %s434, 4
      %s551 = sor.u32 255, 127
      %s552 = sand.u32 %s551, 85
      %s553 = sshrl.u32 %s552, 1
      %s554 = sor.u32 %s552, %s553
      %s555 = sand.u32 51, %s554
      %s556 = sshrl.u32 %s555, 2
      %s557 = sor.u32 %s555, %s556
      %s558 = sand.u32 15, %s557
      %v559 = vld [vmem:[%s549] sm:%s558]
      %v560 = vunpack.c.l.bf16 %v559
      %v561 = vunpack.c.h.bf16 %v559
      %v562 = vlaneseq
      %v563 = vand.u32 %v562, 127
      %vm565 = vcmp.lt.s32.totalorder %v563, 49
      %v566 = vsel %vm565, %v560, %v28
      %v567 = vpack.c.bf16 %v13, %v13
      %v569 = vpack.c.bf16 %v18, %v18
      %v571 = vpack.c.bf16 %v23, %v23
      %v573 = vpack.c.bf16 %v566, %v500
      %575 = xla_tuple %v573, %v571
      %576 = xla_tuple %575
      %v577 = vmax.bf16 %v573, %v571
      %578 = xla_tuple %v577
      %579 = xla_tuple %v577, %v569
      %580 = xla_tuple %579
      %v581 = vmax.bf16 %v577, %v569
      %582 = xla_tuple %v581
      %583 = xla_tuple %v581, %v567
      %584 = xla_tuple %583
      %v585 = vmax.bf16 %v581, %v567
      %586 = xla_tuple %v585
      %v587 = vunpack.c.l.bf16 %v585
      %v588 = vunpack.c.h.bf16 %v585
      %v589 = vpack.c.bf16 0.0, %v587
      %591 = vst [vmem:[#allocation22] sm:$0xf] %v589
      %s592 = scalar_lea.vmem [#allocation22], 4
      %v593 = vpack.c.bf16 0.0, %v588
      %595 = vst [vmem:[%s592] sm:$0xf] %v593
      %s596 = scalar_lea.vmem %s391, 8
      %s597 = ssub.s32 0, 0
      %p598 = scmp.lt.s32.totalorder %s597, 0
      %s599 = scalar_select %p598, 0, 255
      %s600 = sshrl.u32 %s599, 1
      %s601 = sor.u32 %s599, %s600
      %s602 = sand.u32 %s601, 85
      %s603 = sshrl.u32 %s602, 1
      %s604 = sor.u32 %s602, %s603
      %s605 = sand.u32 51, %s604
      %s606 = sshrl.u32 %s605, 2
      %s607 = sor.u32 %s605, %s606
      %s608 = sand.u32 15, %s607
      %v609 = vld [vmem:[%s596] sm:%s608]
      %v610 = vunpack.c.l.bf16 %v609
      %v611 = vunpack.c.h.bf16 %v609
      %s612 = scalar_lea.vmem %s408, 8
      %s613 = ssub.s32 0, 0
      %p614 = scmp.lt.s32.totalorder %s613, 0
      %s615 = scalar_select %p614, 0, 255
      %s616 = sshrl.u32 %s615, 1
      %s617 = sor.u32 %s615, %s616
      %s618 = sand.u32 %s617, 85
      %s619 = sshrl.u32 %s618, 1
      %s620 = sor.u32 %s618, %s619
      %s621 = sand.u32 51, %s620
      %s622 = sshrl.u32 %s621, 2
      %s623 = sor.u32 %s621, %s622
      %s624 = sand.u32 15, %s623
      %v625 = vld [vmem:[%s612] sm:%s624]
      %v626 = vunpack.c.l.bf16 %v625
      %v627 = vunpack.c.h.bf16 %v625
      %s628 = scalar_lea.vmem %s425, 8
      %s629 = ssub.s32 0, 0
      %p630 = scmp.lt.s32.totalorder %s629, 0
      %s631 = scalar_select %p630, 0, 255
      %s632 = sshrl.u32 %s631, 1
      %s633 = sor.u32 %s631, %s632
      %s634 = sand.u32 %s633, 85
      %s635 = sshrl.u32 %s634, 1
      %s636 = sor.u32 %s634, %s635
      %s637 = sand.u32 51, %s636
      %s638 = sshrl.u32 %s637, 2
      %s639 = sor.u32 %s637, %s638
      %s640 = sand.u32 15, %s639
      %v641 = vld [vmem:[%s628] sm:%s640]
      %v642 = vunpack.c.l.bf16 %v641
      %v643 = vunpack.c.h.bf16 %v641
      %s644 = scalar_lea.vmem %s434, 8
      %s646 = sor.u32 255, 127
      %s647 = sand.u32 %s646, 85
      %s648 = sshrl.u32 %s647, 1
      %s649 = sor.u32 %s647, %s648
      %s650 = sand.u32 51, %s649
      %s651 = sshrl.u32 %s650, 2
      %s652 = sor.u32 %s650, %s651
      %s653 = sand.u32 15, %s652
      %v654 = vld [vmem:[%s644] sm:%s653]
      %v655 = vunpack.c.l.bf16 %v654
      %v656 = vunpack.c.h.bf16 %v654
      %v657 = vlaneseq
      %v658 = vand.u32 %v657, 127
      %vm660 = vcmp.lt.s32.totalorder %v658, 49
      %v661 = vsel %vm660, %v655, %v28
      %s662 = scalar_lea.vmem %s391, 12
      %s663 = ssub.s32 0, 0
      %p664 = scmp.lt.s32.totalorder %s663, 0
      %s665 = scalar_select %p664, 0, 255
      %s666 = sshrl.u32 %s665, 1
      %s667 = sor.u32 %s665, %s666
      %s668 = sand.u32 %s667, 85
      %s669 = sshrl.u32 %s668, 1
      %s670 = sor.u32 %s668, %s669
      %s671 = sand.u32 51, %s670
      %s672 = sshrl.u32 %s671, 2
      %s673 = sor.u32 %s671, %s672
      %s674 = sand.u32 15, %s673
      %v675 = vld [vmem:[%s662] sm:%s674]
      %v676 = vunpack.c.l.bf16 %v675
      %v677 = vunpack.c.h.bf16 %v675
      %s678 = scalar_lea.vmem %s408, 12
      %s679 = ssub.s32 0, 0
      %p680 = scmp.lt.s32.totalorder %s679, 0
      %s681 = scalar_select %p680, 0, 255
      %s682 = sshrl.u32 %s681, 1
      %s683 = sor.u32 %s681, %s682
      %s684 = sand.u32 %s683, 85
      %s685 = sshrl.u32 %s684, 1
      %s686 = sor.u32 %s684, %s685
      %s687 = sand.u32 51, %s686
      %s688 = sshrl.u32 %s687, 2
      %s689 = sor.u32 %s687, %s688
      %s690 = sand.u32 15, %s689
      %v691 = vld [vmem:[%s678] sm:%s690]
      %v692 = vunpack.c.l.bf16 %v691
      %v693 = vunpack.c.h.bf16 %v691
      %s694 = scalar_lea.vmem %s425, 12
      %s695 = ssub.s32 0, 0
      %p696 = scmp.lt.s32.totalorder %s695, 0
      %s697 = scalar_select %p696, 0, 255
      %s698 = sshrl.u32 %s697, 1
      %s699 = sor.u32 %s697, %s698
      %s700 = sand.u32 %s699, 85
      %s701 = sshrl.u32 %s700, 1
      %s702 = sor.u32 %s700, %s701
      %s703 = sand.u32 51, %s702
      %s704 = sshrl.u32 %s703, 2
      %s705 = sor.u32 %s703, %s704
      %s706 = sand.u32 15, %s705
      %v707 = vld [vmem:[%s694] sm:%s706]
      %v708 = vunpack.c.l.bf16 %v707
      %v709 = vunpack.c.h.bf16 %v707
      %s710 = scalar_lea.vmem %s434, 12
      %s712 = sor.u32 255, 127
      %s713 = sand.u32 %s712, 85
      %s714 = sshrl.u32 %s713, 1
      %s715 = sor.u32 %s713, %s714
      %s716 = sand.u32 51, %s715
      %s717 = sshrl.u32 %s716, 2
      %s718 = sor.u32 %s716, %s717
      %s719 = sand.u32 15, %s718
      %v720 = vld [vmem:[%s710] sm:%s719]
      %v721 = vunpack.c.l.bf16 %v720
      %v722 = vunpack.c.h.bf16 %v720
      %v723 = vlaneseq
      %v724 = vand.u32 %v723, 127
      %vm726 = vcmp.lt.s32.totalorder %v724, 49
      %v727 = vsel %vm726, %v721, %v28
      %v728 = vpack.c.bf16 %v13, %v13
      %v730 = vpack.c.bf16 %v18, %v18
      %v732 = vpack.c.bf16 %v23, %v23
      %v734 = vpack.c.bf16 %v727, %v661
      %736 = xla_tuple %v734, %v732
      %737 = xla_tuple %736
      %v738 = vmax.bf16 %v734, %v732
      %739 = xla_tuple %v738
      %740 = xla_tuple %v738, %v730
      %741 = xla_tuple %740
      %v742 = vmax.bf16 %v738, %v730
      %743 = xla_tuple %v742
      %744 = xla_tuple %v742, %v728
      %745 = xla_tuple %744
      %v746 = vmax.bf16 %v742, %v728
      %747 = xla_tuple %v746
      %v748 = vunpack.c.l.bf16 %v746
      %v749 = vunpack.c.h.bf16 %v746
      %s750 = scalar_lea.vmem [#allocation22], 8
      %v751 = vpack.c.bf16 0.0, %v748
      %753 = vst [vmem:[%s750] sm:$0xf] %v751
      %s754 = scalar_lea.vmem [#allocation22], 12
      %v755 = vpack.c.bf16 0.0, %v749
      %757 = vst [vmem:[%s754] sm:$0xf] %v755
      %s758 = scalar_lea.vmem %s391, 16
      %s759 = ssub.s32 0, 0
      %p760 = scmp.lt.s32.totalorder %s759, 0
      %s761 = scalar_select %p760, 0, 255
      %s762 = sshrl.u32 %s761, 1
      %s763 = sor.u32 %s761, %s762
      %s764 = sand.u32 %s763, 85
      %s765 = sshrl.u32 %s764, 1
      %s766 = sor.u32 %s764, %s765
      %s767 = sand.u32 51, %s766
      %s768 = sshrl.u32 %s767, 2
      %s769 = sor.u32 %s767, %s768
      %s770 = sand.u32 15, %s769
      %v771 = vld [vmem:[%s758] sm:%s770]
      %v772 = vunpack.c.l.bf16 %v771
      %v773 = vunpack.c.h.bf16 %v771
      %s774 = scalar_lea.vmem %s408, 16
      %s775 = ssub.s32 0, 0
      %p776 = scmp.lt.s32.totalorder %s775, 0
      %s777 = scalar_select %p776, 0, 255
      %s778 = sshrl.u32 %s777, 1
      %s779 = sor.u32 %s777, %s778
      %s780 = sand.u32 %s779, 85
      %s781 = sshrl.u32 %s780, 1
      %s782 = sor.u32 %s780, %s781
      %s783 = sand.u32 51, %s782
      %s784 = sshrl.u32 %s783, 2
      %s785 = sor.u32 %s783, %s784
      %s786 = sand.u32 15, %s785
      %v787 = vld [vmem:[%s774] sm:%s786]
      %v788 = vunpack.c.l.bf16 %v787
      %v789 = vunpack.c.h.bf16 %v787
      %s790 = scalar_lea.vmem %s425, 16
      %s791 = ssub.s32 0, 0
      %p792 = scmp.lt.s32.totalorder %s791, 0
      %s793 = scalar_select %p792, 0, 255
      %s794 = sshrl.u32 %s793, 1
      %s795 = sor.u32 %s793, %s794
      %s796 = sand.u32 %s795, 85
      %s797 = sshrl.u32 %s796, 1
      %s798 = sor.u32 %s796, %s797
      %s799 = sand.u32 51, %s798
      %s800 = sshrl.u32 %s799, 2
      %s801 = sor.u32 %s799, %s800
      %s802 = sand.u32 15, %s801
      %v803 = vld [vmem:[%s790] sm:%s802]
      %v804 = vunpack.c.l.bf16 %v803
      %v805 = vunpack.c.h.bf16 %v803
      %s806 = scalar_lea.vmem %s434, 16
      %s808 = sor.u32 255, 127
      %s809 = sand.u32 %s808, 85
      %s810 = sshrl.u32 %s809, 1
      %s811 = sor.u32 %s809, %s810
      %s812 = sand.u32 51, %s811
      %s813 = sshrl.u32 %s812, 2
      %s814 = sor.u32 %s812, %s813
      %s815 = sand.u32 15, %s814
      %v816 = vld [vmem:[%s806] sm:%s815]
      %v817 = vunpack.c.l.bf16 %v816
      %v818 = vunpack.c.h.bf16 %v816
      %v819 = vlaneseq
      %v820 = vand.u32 %v819, 127
      %vm822 = vcmp.lt.s32.totalorder %v820, 49
      %v823 = vsel %vm822, %v817, %v28
      %s824 = scalar_lea.vmem %s391, 20
      %s825 = ssub.s32 0, 0
      %p826 = scmp.lt.s32.totalorder %s825, 0
      %s827 = scalar_select %p826, 0, 255
      %s828 = sshrl.u32 %s827, 1
      %s829 = sor.u32 %s827, %s828
      %s830 = sand.u32 %s829, 85
      %s831 = sshrl.u32 %s830, 1
      %s832 = sor.u32 %s830, %s831
      %s833 = sand.u32 51, %s832
      %s834 = sshrl.u32 %s833, 2
      %s835 = sor.u32 %s833, %s834
      %s836 = sand.u32 15, %s835
      %v837 = vld [vmem:[%s824] sm:%s836]
      %v838 = vunpack.c.l.bf16 %v837
      %v839 = vunpack.c.h.bf16 %v837
      %s840 = scalar_lea.vmem %s408, 20
      %s841 = ssub.s32 0, 0
      %p842 = scmp.lt.s32.totalorder %s841, 0
      %s843 = scalar_select %p842, 0, 255
      %s844 = sshrl.u32 %s843, 1
      %s845 = sor.u32 %s843, %s844
      %s846 = sand.u32 %s845, 85
      %s847 = sshrl.u32 %s846, 1
      %s848 = sor.u32 %s846, %s847
      %s849 = sand.u32 51, %s848
      %s850 = sshrl.u32 %s849, 2
      %s851 = sor.u32 %s849, %s850
      %s852 = sand.u32 15, %s851
      %v853 = vld [vmem:[%s840] sm:%s852]
      %v854 = vunpack.c.l.bf16 %v853
      %v855 = vunpack.c.h.bf16 %v853
      %s856 = scalar_lea.vmem %s425, 20
      %s857 = ssub.s32 0, 0
      %p858 = scmp.lt.s32.totalorder %s857, 0
      %s859 = scalar_select %p858, 0, 255
      %s860 = sshrl.u32 %s859, 1
      %s861 = sor.u32 %s859, %s860
      %s862 = sand.u32 %s861, 85
      %s863 = sshrl.u32 %s862, 1
      %s864 = sor.u32 %s862, %s863
      %s865 = sand.u32 51, %s864
      %s866 = sshrl.u32 %s865, 2
      %s867 = sor.u32 %s865, %s866
      %s868 = sand.u32 15, %s867
      %v869 = vld [vmem:[%s856] sm:%s868]
      %v870 = vunpack.c.l.bf16 %v869
      %v871 = vunpack.c.h.bf16 %v869
      %s872 = scalar_lea.vmem %s434, 20
      %s874 = sor.u32 255, 127
      %s875 = sand.u32 %s874, 85
      %s876 = sshrl.u32 %s875, 1
      %s877 = sor.u32 %s875, %s876
      %s878 = sand.u32 51, %s877
      %s879 = sshrl.u32 %s878, 2
      %s880 = sor.u32 %s878, %s879
      %s881 = sand.u32 15, %s880
      %v882 = vld [vmem:[%s872] sm:%s881]
      %v883 = vunpack.c.l.bf16 %v882
      %v884 = vunpack.c.h.bf16 %v882
      %v885 = vlaneseq
      %v886 = vand.u32 %v885, 127
      %vm888 = vcmp.lt.s32.totalorder %v886, 49
      %v889 = vsel %vm888, %v883, %v28
      %v890 = vpack.c.bf16 %v13, %v13
      %v892 = vpack.c.bf16 %v18, %v18
      %v894 = vpack.c.bf16 %v23, %v23
      %v896 = vpack.c.bf16 %v889, %v823
      %898 = xla_tuple %v896, %v894
      %899 = xla_tuple %898
      %v900 = vmax.bf16 %v896, %v894
      %901 = xla_tuple %v900
      %902 = xla_tuple %v900, %v892
      %903 = xla_tuple %902
      %v904 = vmax.bf16 %v900, %v892
      %905 = xla_tuple %v904
      %906 = xla_tuple %v904, %v890
      %907 = xla_tuple %906
      %v908 = vmax.bf16 %v904, %v890
      %909 = xla_tuple %v908
      %v910 = vunpack.c.l.bf16 %v908
      %v911 = vunpack.c.h.bf16 %v908
      %s912 = scalar_lea.vmem [#allocation22], 16
      %v913 = vpack.c.bf16 0.0, %v910
      %915 = vst [vmem:[%s912] sm:$0xf] %v913
      %s916 = scalar_lea.vmem [#allocation22], 20
      %v917 = vpack.c.bf16 0.0, %v911
      %919 = vst [vmem:[%s916] sm:$0xf] %v917
      %v920 = vlaneseq
      %v921 = vand.u32 %v920, 127
      %vm923 = vcmp.lt.s32.totalorder %v921, 49
      %v924 = vsel %vm923, %v482, %v23
      %s925 = scalar_lea.vmem %s391, 4
      %s926 = scalar_lea.vmem %s408, 4
      %s927 = scalar_lea.vmem %s425, 4
      %v928 = vlaneseq
      %v929 = vand.u32 %v928, 127
      %vm931 = vcmp.lt.s32.totalorder %v929, 49
      %v932 = vsel %vm931, %v547, %v23
      %v933 = vpack.c.bf16 %v13, %v13
      %v935 = vpack.c.bf16 %v18, %v18
      %v937 = vpack.c.bf16 %v932, %v924
      %v939 = vpack.c.bf16 %v28, %v28
      %941 = xla_tuple %v939, %v937
      %942 = xla_tuple %941
      %v943 = vmax.bf16 %v939, %v937
      %944 = xla_tuple %v943
      %945 = xla_tuple %v943, %v935
      %946 = xla_tuple %945
      %v947 = vmax.bf16 %v943, %v935
      %948 = xla_tuple %v947
      %949 = xla_tuple %v947, %v933
      %950 = xla_tuple %949
      %v951 = vmax.bf16 %v947, %v933
      %952 = xla_tuple %v951
      %v953 = vunpack.c.l.bf16 %v951
      %v954 = vunpack.c.h.bf16 %v951
      %s955 = scalar_lea.vmem [#allocation22], 24
      %v956 = vpack.c.bf16 0.0, %v953
      %958 = vst [vmem:[%s955] sm:$0xf] %v956
      %s959 = scalar_lea.vmem [#allocation22], 28
      %v960 = vpack.c.bf16 0.0, %v954
      %962 = vst [vmem:[%s959] sm:$0xf] %v960
      %s963 = scalar_lea.vmem %s391, 8
      %s964 = scalar_lea.vmem %s408, 8
      %s965 = scalar_lea.vmem %s425, 8
      %v966 = vlaneseq
      %v967 = vand.u32 %v966, 127
      %vm969 = vcmp.lt.s32.totalorder %v967, 49
      %v970 = vsel %vm969, %v642, %v23
      %s971 = scalar_lea.vmem %s391, 12
      %s972 = scalar_lea.vmem %s408, 12
      %s973 = scalar_lea.vmem %s425, 12
      %v974 = vlaneseq
      %v975 = vand.u32 %v974, 127
      %vm977 = vcmp.lt.s32.totalorder %v975, 49
      %v978 = vsel %vm977, %v708, %v23
      %v979 = vpack.c.bf16 %v13, %v13
      %v981 = vpack.c.bf16 %v18, %v18
      %v983 = vpack.c.bf16 %v978, %v970
      %v985 = vpack.c.bf16 %v28, %v28
      %987 = xla_tuple %v985, %v983
      %988 = xla_tuple %987
      %v989 = vmax.bf16 %v985, %v983
      %990 = xla_tuple %v989
      %991 = xla_tuple %v989, %v981
      %992 = xla_tuple %991
      %v993 = vmax.bf16 %v989, %v981
      %994 = xla_tuple %v993
      %995 = xla_tuple %v993, %v979
      %996 = xla_tuple %995
      %v997 = vmax.bf16 %v993, %v979
      %998 = xla_tuple %v997
      %v999 = vunpack.c.l.bf16 %v997
      %v1000 = vunpack.c.h.bf16 %v997
      %s1001 = scalar_lea.vmem [#allocation22], 32
      %v1002 = vpack.c.bf16 0.0, %v999
      %1004 = vst [vmem:[%s1001] sm:$0xf] %v1002
      %s1005 = scalar_lea.vmem [#allocation22], 36
      %v1006 = vpack.c.bf16 0.0, %v1000
      %1008 = vst [vmem:[%s1005] sm:$0xf] %v1006
      %s1009 = scalar_lea.vmem %s391, 16
      %s1010 = scalar_lea.vmem %s408, 16
      %s1011 = scalar_lea.vmem %s425, 16
      %v1012 = vlaneseq
      %v1013 = vand.u32 %v1012, 127
      %vm1015 = vcmp.lt.s32.totalorder %v1013, 49
      %v1016 = vsel %vm1015, %v804, %v23
      %s1017 = scalar_lea.vmem %s391, 20
      %s1018 = scalar_lea.vmem %s408, 20
      %s1019 = scalar_lea.vmem %s425, 20
      %v1020 = vlaneseq
      %v1021 = vand.u32 %v1020, 127
      %vm1023 = vcmp.lt.s32.totalorder %v1021, 49
      %v1024 = vsel %vm1023, %v870, %v23
      %v1025 = vpack.c.bf16 %v13, %v13
      %v1027 = vpack.c.bf16 %v18, %v18
      %v1029 = vpack.c.bf16 %v1024, %v1016
      %v1031 = vpack.c.bf16 %v28, %v28
      %1033 = xla_tuple %v1031, %v1029
      %1034 = xla_tuple %1033
      %v1035 = vmax.bf16 %v1031, %v1029
      %1036 = xla_tuple %v1035
      %1037 = xla_tuple %v1035, %v1027
      %1038 = xla_tuple %1037
      %v1039 = vmax.bf16 %v1035, %v1027
      %1040 = xla_tuple %v1039
      %1041 = xla_tuple %v1039, %v1025
      %1042 = xla_tuple %1041
      %v1043 = vmax.bf16 %v1039, %v1025
      %1044 = xla_tuple %v1043
      %v1045 = vunpack.c.l.bf16 %v1043
      %v1046 = vunpack.c.h.bf16 %v1043
      %s1047 = scalar_lea.vmem [#allocation22], 40
      %v1048 = vpack.c.bf16 0.0, %v1045
      %1050 = vst [vmem:[%s1047] sm:$0xf] %v1048
      %s1051 = scalar_lea.vmem [#allocation22], 44
      %v1052 = vpack.c.bf16 0.0, %v1046
      %1054 = vst [vmem:[%s1051] sm:$0xf] %v1052
      %v1055 = vlaneseq
      %v1056 = vand.u32 %v1055, 127
      %vm1058 = vcmp.lt.s32.totalorder %v1056, 49
      %v1059 = vsel %vm1058, %v467, %v18
      %s1060 = scalar_lea.vmem %s391, 4
      %s1061 = scalar_lea.vmem %s408, 4
      %v1062 = vlaneseq
      %v1063 = vand.u32 %v1062, 127
      %vm1065 = vcmp.lt.s32.totalorder %v1063, 49
      %v1066 = vsel %vm1065, %v531, %v18
      %s1067 = scalar_lea.vmem %s425, 4
      %v1068 = vpack.c.bf16 %v13, %v13
      %v1070 = vpack.c.bf16 %v1066, %v1059
      %v1072 = vpack.c.bf16 %v23, %v23
      %v1074 = vpack.c.bf16 %v28, %v28
      %1076 = xla_tuple %v1074, %v1072
      %1077 = xla_tuple %1076
      %v1078 = vmax.bf16 %v1074, %v1072
      %1079 = xla_tuple %v1078
      %1080 = xla_tuple %v1078, %v1070
      %1081 = xla_tuple %1080
      %v1082 = vmax.bf16 %v1078, %v1070
      %1083 = xla_tuple %v1082
      %1084 = xla_tuple %v1082, %v1068
      %1085 = xla_tuple %1084
      %v1086 = vmax.bf16 %v1082, %v1068
      %1087 = xla_tuple %v1086
      %v1088 = vunpack.c.l.bf16 %v1086
      %v1089 = vunpack.c.h.bf16 %v1086
      %s1090 = scalar_lea.vmem [#allocation22], 48
      %v1091 = vpack.c.bf16 0.0, %v1088
      %1093 = vst [vmem:[%s1090] sm:$0xf] %v1091
      %s1094 = scalar_lea.vmem [#allocation22], 52
      %v1095 = vpack.c.bf16 0.0, %v1089
      %1097 = vst [vmem:[%s1094] sm:$0xf] %v1095
      %s1098 = scalar_lea.vmem %s391, 8
      %s1099 = scalar_lea.vmem %s408, 8
      %v1100 = vlaneseq
      %v1101 = vand.u32 %v1100, 127
      %vm1103 = vcmp.lt.s32.totalorder %v1101, 49
      %v1104 = vsel %vm1103, %v626, %v18
      %s1105 = scalar_lea.vmem %s425, 8
      %s1106 = scalar_lea.vmem %s391, 12
      %s1107 = scalar_lea.vmem %s408, 12
      %v1108 = vlaneseq
      %v1109 = vand.u32 %v1108, 127
      %vm1111 = vcmp.lt.s32.totalorder %v1109, 49
      %v1112 = vsel %vm1111, %v692, %v18
      %s1113 = scalar_lea.vmem %s425, 12
      %v1114 = vpack.c.bf16 %v13, %v13
      %v1116 = vpack.c.bf16 %v1112, %v1104
      %v1118 = vpack.c.bf16 %v23, %v23
      %v1120 = vpack.c.bf16 %v28, %v28
      %1122 = xla_tuple %v1120, %v1118
      %1123 = xla_tuple %1122
      %v1124 = vmax.bf16 %v1120, %v1118
      %1125 = xla_tuple %v1124
      %1126 = xla_tuple %v1124, %v1116
      %1127 = xla_tuple %1126
      %v1128 = vmax.bf16 %v1124, %v1116
      %1129 = xla_tuple %v1128
      %1130 = xla_tuple %v1128, %v1114
      %1131 = xla_tuple %1130
      %v1132 = vmax.bf16 %v1128, %v1114
      %1133 = xla_tuple %v1132
      %v1134 = vunpack.c.l.bf16 %v1132
      %v1135 = vunpack.c.h.bf16 %v1132
      %s1136 = scalar_lea.vmem [#allocation22], 56
      %v1137 = vpack.c.bf16 0.0, %v1134
      %1139 = vst [vmem:[%s1136] sm:$0xf] %v1137
      %s1140 = scalar_lea.vmem [#allocation22], 60
      %v1141 = vpack.c.bf16 0.0, %v1135
      %1143 = vst [vmem:[%s1140] sm:$0xf] %v1141
      %s1144 = scalar_lea.vmem %s391, 16
      %s1145 = scalar_lea.vmem %s408, 16
      %v1146 = vlaneseq
      %v1147 = vand.u32 %v1146, 127
      %vm1149 = vcmp.lt.s32.totalorder %v1147, 49
      %v1150 = vsel %vm1149, %v788, %v18
      %s1151 = scalar_lea.vmem %s425, 16
      %s1152 = scalar_lea.vmem %s391, 20
      %s1153 = scalar_lea.vmem %s408, 20
      %v1154 = vlaneseq
      %v1155 = vand.u32 %v1154, 127
      %vm1157 = vcmp.lt.s32.totalorder %v1155, 49
      %v1158 = vsel %vm1157, %v854, %v18
      %s1159 = scalar_lea.vmem %s425, 20
      %v1160 = vpack.c.bf16 %v13, %v13
      %v1162 = vpack.c.bf16 %v1158, %v1150
      %v1164 = vpack.c.bf16 %v23, %v23
      %v1166 = vpack.c.bf16 %v28, %v28
      %1168 = xla_tuple %v1166, %v1164
      %1169 = xla_tuple %1168
      %v1170 = vmax.bf16 %v1166, %v1164
      %1171 = xla_tuple %v1170
      %1172 = xla_tuple %v1170, %v1162
      %1173 = xla_tuple %1172
      %v1174 = vmax.bf16 %v1170, %v1162
      %1175 = xla_tuple %v1174
      %1176 = xla_tuple %v1174, %v1160
      %1177 = xla_tuple %1176
      %v1178 = vmax.bf16 %v1174, %v1160
      %1179 = xla_tuple %v1178
      %v1180 = vunpack.c.l.bf16 %v1178
      %v1181 = vunpack.c.h.bf16 %v1178
      %s1182 = scalar_lea.vmem [#allocation22], 64
      %v1183 = vpack.c.bf16 0.0, %v1180
      %1185 = vst [vmem:[%s1182] sm:$0xf] %v1183
      %s1186 = scalar_lea.vmem [#allocation22], 68
      %v1187 = vpack.c.bf16 0.0, %v1181
      %1189 = vst [vmem:[%s1186] sm:$0xf] %v1187
      %v1190 = vlaneseq
      %v1191 = vand.u32 %v1190, 127
      %vm1193 = vcmp.lt.s32.totalorder %v1191, 49
      %v1194 = vsel %vm1193, %v452, %v13
      %s1195 = scalar_lea.vmem %s391, 4
      %v1196 = vlaneseq
      %v1197 = vand.u32 %v1196, 127
      %vm1199 = vcmp.lt.s32.totalorder %v1197, 49
      %v1200 = vsel %vm1199, %v515, %v13
      %s1201 = scalar_lea.vmem %s408, 4
      %s1202 = scalar_lea.vmem %s425, 4
      %v1203 = vpack.c.bf16 %v1200, %v1194
      %v1205 = vpack.c.bf16 %v18, %v18
      %v1207 = vpack.c.bf16 %v23, %v23
      %v1209 = vpack.c.bf16 %v28, %v28
      %1211 = xla_tuple %v1209, %v1207
      %1212 = xla_tuple %1211
      %v1213 = vmax.bf16 %v1209, %v1207
      %1214 = xla_tuple %v1213
      %1215 = xla_tuple %v1213, %v1205
      %1216 = xla_tuple %1215
      %v1217 = vmax.bf16 %v1213, %v1205
      %1218 = xla_tuple %v1217
      %1219 = xla_tuple %v1217, %v1203
      %1220 = xla_tuple %1219
      %v1221 = vmax.bf16 %v1217, %v1203
      %1222 = xla_tuple %v1221
      %v1223 = vunpack.c.l.bf16 %v1221
      %v1224 = vunpack.c.h.bf16 %v1221
      %s1225 = scalar_lea.vmem [#allocation22], 72
      %v1226 = vpack.c.bf16 0.0, %v1223
      %1228 = vst [vmem:[%s1225] sm:$0xf] %v1226
      %s1229 = scalar_lea.vmem [#allocation22], 76
      %v1230 = vpack.c.bf16 0.0, %v1224
      %1232 = vst [vmem:[%s1229] sm:$0xf] %v1230
      %s1233 = scalar_lea.vmem %s391, 8
      %v1234 = vlaneseq
      %v1235 = vand.u32 %v1234, 127
      %vm1237 = vcmp.lt.s32.totalorder %v1235, 49
      %v1238 = vsel %vm1237, %v610, %v13
      %s1239 = scalar_lea.vmem %s408, 8
      %s1240 = scalar_lea.vmem %s425, 8
      %s1241 = scalar_lea.vmem %s391, 12
      %v1242 = vlaneseq
      %v1243 = vand.u32 %v1242, 127
      %vm1245 = vcmp.lt.s32.totalorder %v1243, 49
      %v1246 = vsel %vm1245, %v676, %v13
      %s1247 = scalar_lea.vmem %s408, 12
      %s1248 = scalar_lea.vmem %s425, 12
      %v1249 = vpack.c.bf16 %v1246, %v1238
      %v1251 = vpack.c.bf16 %v18, %v18
      %v1253 = vpack.c.bf16 %v23, %v23
      %v1255 = vpack.c.bf16 %v28, %v28
      %1257 = xla_tuple %v1255, %v1253
      %1258 = xla_tuple %1257
      %v1259 = vmax.bf16 %v1255, %v1253
      %1260 = xla_tuple %v1259
      %1261 = xla_tuple %v1259, %v1251
      %1262 = xla_tuple %1261
      %v1263 = vmax.bf16 %v1259, %v1251
      %1264 = xla_tuple %v1263
      %1265 = xla_tuple %v1263, %v1249
      %1266 = xla_tuple %1265
      %v1267 = vmax.bf16 %v1263, %v1249
      %1268 = xla_tuple %v1267
      %v1269 = vunpack.c.l.bf16 %v1267
      %v1270 = vunpack.c.h.bf16 %v1267
      %s1271 = scalar_lea.vmem [#allocation22], 80
      %v1272 = vpack.c.bf16 0.0, %v1269
      %1274 = vst [vmem:[%s1271] sm:$0xf] %v1272
      %s1275 = scalar_lea.vmem [#allocation22], 84
      %v1276 = vpack.c.bf16 0.0, %v1270
      %1278 = vst [vmem:[%s1275] sm:$0xf] %v1276
      %s1279 = scalar_lea.vmem %s391, 16
      %v1280 = vlaneseq
      %v1281 = vand.u32 %v1280, 127
      %vm1283 = vcmp.lt.s32.totalorder %v1281, 49
      %v1284 = vsel %vm1283, %v772, %v13
      %s1285 = scalar_lea.vmem %s408, 16
      %s1286 = scalar_lea.vmem %s425, 16
      %s1287 = scalar_lea.vmem %s391, 20
      %v1288 = vlaneseq
      %v1289 = vand.u32 %v1288, 127
      %vm1291 = vcmp.lt.s32.totalorder %v1289, 49
      %v1292 = vsel %vm1291, %v838, %v13
      %s1293 = scalar_lea.vmem %s408, 20
      %s1294 = scalar_lea.vmem %s425, 20
      %v1295 = vpack.c.bf16 %v1292, %v1284
      %v1297 = vpack.c.bf16 %v18, %v18
      %v1299 = vpack.c.bf16 %v23, %v23
      %v1301 = vpack.c.bf16 %v28, %v28
      %1303 = xla_tuple %v1301, %v1299
      %1304 = xla_tuple %1303
      %v1305 = vmax.bf16 %v1301, %v1299
      %1306 = xla_tuple %v1305
      %1307 = xla_tuple %v1305, %v1297
      %1308 = xla_tuple %1307
      %v1309 = vmax.bf16 %v1305, %v1297
      %1310 = xla_tuple %v1309
      %1311 = xla_tuple %v1309, %v1295
      %1312 = xla_tuple %1311
      %v1313 = vmax.bf16 %v1309, %v1295
      %1314 = xla_tuple %v1313
      %v1315 = vunpack.c.l.bf16 %v1313
      %v1316 = vunpack.c.h.bf16 %v1313
      %s1317 = scalar_lea.vmem [#allocation22], 88
      %v1318 = vpack.c.bf16 0.0, %v1315
      %1320 = vst [vmem:[%s1317] sm:$0xf] %v1318
      %s1321 = scalar_lea.vmem [#allocation22], 92
      %v1322 = vpack.c.bf16 0.0, %v1316
      %1324 = vst [vmem:[%s1321] sm:$0xf] %v1322
      %v1326 = vld [vmem:[%s0] sm:$0xf]
      %v1327 = vld [vmem:[%s1] sm:$0xff]
      %v1328 = vld [vmem:[#allocation22] sm:$0xf]
      %v1329 = vld [vmem:[#allocation22 + $0x4] sm:$0xf]
      %v1330 = vld [vmem:[#allocation22 + $0x8] sm:$0xf]
      %v1331 = vld [vmem:[#allocation22 + $0xc] sm:$0xf]
      %v1332 = vld [vmem:[#allocation22 + $0x10] sm:$0xf]
      %v1333 = vld [vmem:[#allocation22 + $0x14] sm:$0xf]
      %1335 = vset.pattern.permute.xlu0 0
      %1336 = vperm.xlu0 %1335, %v1327
      %v1337 = vpop.permute.xlu0 %1336
      %v1345 = vunpack.c.l.b16 %v1328
      %v1346 = vunpack.c.l.b16 %v1329
      %v1347 = vunpack.c.l.b16 %v1330
      %v1348 = vunpack.c.l.b16 %v1331
      %v1349 = vunpack.c.l.b16 %v1332
      %v1350 = vunpack.c.l.b16 %v1333
      %v1351 = vpack.c.b16 %v1346, %v1345
      %v1352 = vpack.c.b16 %v1348, %v1347
      %v1353 = vpack.c.b16 %v1350, %v1349
      %vm1357 = vcmask 392192
      %v1359 = vsel %vm1357, %v1326, 0
      %1361 = vmatprep.subr.bf16.mxu0 0
      %1362 = vmatpush1.bf16.msra.mxu0 %v1351
      %1363 = vmatprep.subr.bf16.mxu0 0
      %1364 = vmatpush1.bf16.msra.mxu0 %v1352
      %1365 = vmatprep.subr.bf16.mxu0 0
      %1366 = vmatpush1.bf16.msra.mxu0 %v1353
      %1367 = vmatprep.subr.bf16.mxu0 0
      %1368 = vmatpush1.bf16.msra.mxu0 0
      %1369 = vmatprep.subr.bf16.mxu0 0
      %1370 = vmatpush1.bf16.msra.mxu0 0
      %1371 = vmatprep.subr.bf16.mxu0 0
      %1372 = vmatpush1.bf16.msra.mxu0 0
      %1373 = vmatprep.subr.bf16.mxu0 0
      %1374 = vmatpush1.bf16.msra.mxu0 0
      %1375 = vmatprep.subr.bf16.mxu0 0
      %1376 = vmatpush1.bf16.msra.mxu0 0
      %1377 = vmatprep.subr.bf16.mxu0 0
      %1378 = vmatpush1.bf16.msra.mxu0 0
      %1379 = vmatprep.subr.bf16.mxu0 0
      %1380 = vmatpush1.bf16.msra.mxu0 0
      %1381 = vmatprep.subr.bf16.mxu0 0
      %1382 = vmatpush1.bf16.msra.mxu0 0
      %1383 = vmatprep.subr.bf16.mxu0 0
      %1384 = vmatpush1.bf16.msra.mxu0 0
      %1385 = vmatprep.subr.bf16.mxu0 0
      %1386 = vmatpush1.bf16.msra.mxu0 0
      %1387 = vmatprep.subr.bf16.mxu0 0
      %1388 = vmatpush1.bf16.msra.mxu0 0
      %1389 = vmatprep.subr.bf16.mxu0 0
      %1390 = vmatpush1.bf16.msra.mxu0 0
      %1391 = vmatprep.subr.bf16.mxu0 0
      %1392 = vmatpush1.bf16.msra.mxu0 0
      %1393 = vmatprep.mubr.bf16.mxu0 0
      %1394 = vmatmul.mubr.bf16.gmra.mrb[0].mxu0 %v1359
      %v1395 = vpop.f32.mrb[0].mxu0
      %v1396 = vadd.f32 %v1337, %v1395
      %v1397 = vpop.f32.mrb[0].mxu0
      %v1398 = vpop.f32.mrb[0].mxu0
      %v1399 = vpop.f32.mrb[0].mxu0
      %1400 = vdwg.mxu0
      %v1401 = vmul.f32 %v1396, 0.1
      %v1402 = vmax.f32 %v1396, %v1401
      %1403 = vset.pattern.permute.xlu0 1
      %1404 = vperm.xlu0 %1403, %v1327
      %v1405 = vpop.permute.xlu0 %1404
      %v1407 = vmul.f32 %v1402, %v1405
      %v1408 = vadd.f32 %v1396, %v1407
      %1409 = vset.pattern.permute.xlu0 2
      %1410 = vperm.xlu0 %1409, %v1327
      %v1411 = vpop.permute.xlu0 %1410
      %v1413 = vadd.f32 %v1408, %v1411
      %s1414 = scalar_lea.vmem [#allocation22], 24
      %v1415 = vld [vmem:[%s1414] sm:$0xf]
      %v1416 = vld [vmem:[%s1414 + $0x4] sm:$0xf]
      %v1417 = vld [vmem:[%s1414 + $0x8] sm:$0xf]
      %v1418 = vld [vmem:[%s1414 + $0xc] sm:$0xf]
      %v1419 = vld [vmem:[%s1414 + $0x10] sm:$0xf]
      %v1420 = vld [vmem:[%s1414 + $0x14] sm:$0xf]
      %v1427 = vunpack.c.l.b16 %v1415
      %v1428 = vunpack.c.l.b16 %v1416
      %v1429 = vunpack.c.l.b16 %v1417
      %v1430 = vunpack.c.l.b16 %v1418
      %v1431 = vunpack.c.l.b16 %v1419
      %v1432 = vunpack.c.l.b16 %v1420
      %v1433 = vpack.c.b16 %v1428, %v1427
      %v1434 = vpack.c.b16 %v1430, %v1429
      %v1435 = vpack.c.b16 %v1432, %v1431
      %1439 = vmatprep.subr.bf16.mxu0 0
      %1440 = vmatpush1.bf16.msra.mxu0 %v1433
      %1441 = vmatprep.subr.bf16.mxu0 0
      %1442 = vmatpush1.bf16.msra.mxu0 %v1434
      %1443 = vmatprep.subr.bf16.mxu0 0
      %1444 = vmatpush1.bf16.msra.mxu0 %v1435
      %1445 = vmatprep.subr.bf16.mxu0 0
      %1446 = vmatpush1.bf16.msra.mxu0 0
      %1447 = vmatprep.subr.bf16.mxu0 0
      %1448 = vmatpush1.bf16.msra.mxu0 0
      %1449 = vmatprep.subr.bf16.mxu0 0
      %1450 = vmatpush1.bf16.msra.mxu0 0
      %1451 = vmatprep.subr.bf16.mxu0 0
      %1452 = vmatpush1.bf16.msra.mxu0 0
      %1453 = vmatprep.subr.bf16.mxu0 0
      %1454 = vmatpush1.bf16.msra.mxu0 0
      %1455 = vmatprep.subr.bf16.mxu0 0
      %1456 = vmatpush1.bf16.msra.mxu0 0
      %1457 = vmatprep.subr.bf16.mxu0 0
      %1458 = vmatpush1.bf16.msra.mxu0 0
      %1459 = vmatprep.subr.bf16.mxu0 0
      %1460 = vmatpush1.bf16.msra.mxu0 0
      %1461 = vmatprep.subr.bf16.mxu0 0
      %1462 = vmatpush1.bf16.msra.mxu0 0
      %1463 = vmatprep.subr.bf16.mxu0 0
      %1464 = vmatpush1.bf16.msra.mxu0 0
      %1465 = vmatprep.subr.bf16.mxu0 0
      %1466 = vmatpush1.bf16.msra.mxu0 0
      %1467 = vmatprep.subr.bf16.mxu0 0
      %1468 = vmatpush1.bf16.msra.mxu0 0
      %1469 = vmatprep.subr.bf16.mxu0 0
      %1470 = vmatpush1.bf16.msra.mxu0 0
      %1471 = vmatprep.mubr.bf16.mxu0 0
      %1472 = vmatmul.mubr.bf16.gmra.mrb[0].mxu0 %v1359
      %v1473 = vpop.f32.mrb[0].mxu0
      %v1474 = vadd.f32 %v1337, %v1473
      %v1475 = vpop.f32.mrb[0].mxu0
      %v1476 = vpop.f32.mrb[0].mxu0
      %v1477 = vpop.f32.mrb[0].mxu0
      %1478 = vdwg.mxu0
      %v1479 = vmul.f32 %v1474, 0.1
      %v1480 = vmax.f32 %v1474, %v1479
      %v1481 = vmul.f32 %v1480, %v1405
      %v1482 = vadd.f32 %v1474, %v1481
      %v1483 = vadd.f32 %v1482, %v1411
      %v1484 = vmax.f32 %v1413, %v1483
      %s1485 = scalar_lea.vmem [#allocation22], 48
      %v1486 = vld [vmem:[%s1485] sm:$0xf]
      %v1487 = vld [vmem:[%s1485 + $0x4] sm:$0xf]
      %v1488 = vld [vmem:[%s1485 + $0x8] sm:$0xf]
      %v1489 = vld [vmem:[%s1485 + $0xc] sm:$0xf]
      %v1490 = vld [vmem:[%s1485 + $0x10] sm:$0xf]
      %v1491 = vld [vmem:[%s1485 + $0x14] sm:$0xf]
      %v1498 = vunpack.c.l.b16 %v1486
      %v1499 = vunpack.c.l.b16 %v1487
      %v1500 = vunpack.c.l.b16 %v1488
      %v1501 = vunpack.c.l.b16 %v1489
      %v1502 = vunpack.c.l.b16 %v1490
      %v1503 = vunpack.c.l.b16 %v1491
      %v1504 = vpack.c.b16 %v1499, %v1498
      %v1505 = vpack.c.b16 %v1501, %v1500
      %v1506 = vpack.c.b16 %v1503, %v1502
      %1510 = vmatprep.subr.bf16.mxu0 0
      %1511 = vmatpush1.bf16.msra.mxu0 %v1504
      %1512 = vmatprep.subr.bf16.mxu0 0
      %1513 = vmatpush1.bf16.msra.mxu0 %v1505
      %1514 = vmatprep.subr.bf16.mxu0 0
      %1515 = vmatpush1.bf16.msra.mxu0 %v1506
      %1516 = vmatprep.subr.bf16.mxu0 0
      %1517 = vmatpush1.bf16.msra.mxu0 0
      %1518 = vmatprep.subr.bf16.mxu0 0
      %1519 = vmatpush1.bf16.msra.mxu0 0
      %1520 = vmatprep.subr.bf16.mxu0 0
      %1521 = vmatpush1.bf16.msra.mxu0 0
      %1522 = vmatprep.subr.bf16.mxu0 0
      %1523 = vmatpush1.bf16.msra.mxu0 0
      %1524 = vmatprep.subr.bf16.mxu0 0
      %1525 = vmatpush1.bf16.msra.mxu0 0
      %1526 = vmatprep.subr.bf16.mxu0 0
      %1527 = vmatpush1.bf16.msra.mxu0 0
      %1528 = vmatprep.subr.bf16.mxu0 0
      %1529 = vmatpush1.bf16.msra.mxu0 0
      %1530 = vmatprep.subr.bf16.mxu0 0
      %1531 = vmatpush1.bf16.msra.mxu0 0
      %1532 = vmatprep.subr.bf16.mxu0 0
      %1533 = vmatpush1.bf16.msra.mxu0 0
      %1534 = vmatprep.subr.bf16.mxu0 0
      %1535 = vmatpush1.bf16.msra.mxu0 0
      %1536 = vmatprep.subr.bf16.mxu0 0
      %1537 = vmatpush1.bf16.msra.mxu0 0
      %1538 = vmatprep.subr.bf16.mxu0 0
      %1539 = vmatpush1.bf16.msra.mxu0 0
      %1540 = vmatprep.subr.bf16.mxu0 0
      %1541 = vmatpush1.bf16.msra.mxu0 0
      %1542 = vmatprep.mubr.bf16.mxu0 0
      %1543 = vmatmul.mubr.bf16.gmra.mrb[0].mxu0 %v1359
      %v1544 = vpop.f32.mrb[0].mxu0
      %v1545 = vadd.f32 %v1337, %v1544
      %v1546 = vpop.f32.mrb[0].mxu0
      %v1547 = vpop.f32.mrb[0].mxu0
      %v1548 = vpop.f32.mrb[0].mxu0
      %1549 = vdwg.mxu0
      %v1550 = vmul.f32 %v1545, 0.1
      %v1551 = vmax.f32 %v1545, %v1550
      %v1552 = vmul.f32 %v1551, %v1405
      %v1553 = vadd.f32 %v1545, %v1552
      %v1554 = vadd.f32 %v1553, %v1411
      %v1555 = vmax.f32 %v1484, %v1554
      %s1556 = scalar_lea.vmem [#allocation22], 72
      %v1557 = vld [vmem:[%s1556] sm:$0xf]
      %v1558 = vld [vmem:[%s1556 + $0x4] sm:$0xf]
      %v1559 = vld [vmem:[%s1556 + $0x8] sm:$0xf]
      %v1560 = vld [vmem:[%s1556 + $0xc] sm:$0xf]
      %v1561 = vld [vmem:[%s1556 + $0x10] sm:$0xf]
      %v1562 = vld [vmem:[%s1556 + $0x14] sm:$0xf]
      %v1569 = vunpack.c.l.b16 %v1557
      %v1570 = vunpack.c.l.b16 %v1558
      %v1571 = vunpack.c.l.b16 %v1559
      %v1572 = vunpack.c.l.b16 %v1560
      %v1573 = vunpack.c.l.b16 %v1561
      %v1574 = vunpack.c.l.b16 %v1562
      %v1575 = vpack.c.b16 %v1570, %v1569
      %v1576 = vpack.c.b16 %v1572, %v1571
      %v1577 = vpack.c.b16 %v1574, %v1573
      %1581 = vmatprep.subr.bf16.mxu0 0
      %1582 = vmatpush1.bf16.msra.mxu0 %v1575
      %1583 = vmatprep.subr.bf16.mxu0 0
      %1584 = vmatpush1.bf16.msra.mxu0 %v1576
      %1585 = vmatprep.subr.bf16.mxu0 0
      %1586 = vmatpush1.bf16.msra.mxu0 %v1577
      %1587 = vmatprep.subr.bf16.mxu0 0
      %1588 = vmatpush1.bf16.msra.mxu0 0
      %1589 = vmatprep.subr.bf16.mxu0 0
      %1590 = vmatpush1.bf16.msra.mxu0 0
      %1591 = vmatprep.subr.bf16.mxu0 0
      %1592 = vmatpush1.bf16.msra.mxu0 0
      %1593 = vmatprep.subr.bf16.mxu0 0
      %1594 = vmatpush1.bf16.msra.mxu0 0
      %1595 = vmatprep.subr.bf16.mxu0 0
      %1596 = vmatpush1.bf16.msra.mxu0 0
      %1597 = vmatprep.subr.bf16.mxu0 0
      %1598 = vmatpush1.bf16.msra.mxu0 0
      %1599 = vmatprep.subr.bf16.mxu0 0
      %1600 = vmatpush1.bf16.msra.mxu0 0
      %1601 = vmatprep.subr.bf16.mxu0 0
      %1602 = vmatpush1.bf16.msra.mxu0 0
      %1603 = vmatprep.subr.bf16.mxu0 0
      %1604 = vmatpush1.bf16.msra.mxu0 0
      %1605 = vmatprep.subr.bf16.mxu0 0
      %1606 = vmatpush1.bf16.msra.mxu0 0
      %1607 = vmatprep.subr.bf16.mxu0 0
      %1608 = vmatpush1.bf16.msra.mxu0 0
      %1609 = vmatprep.subr.bf16.mxu0 0
      %1610 = vmatpush1.bf16.msra.mxu0 0
      %1611 = vmatprep.subr.bf16.mxu0 0
      %1612 = vmatpush1.bf16.msra.mxu0 0
      %1613 = vmatprep.mubr.bf16.mxu0 0
      %1614 = vmatmul.mubr.bf16.gmra.mrb[0].mxu0 %v1359
      %v1615 = vpop.f32.mrb[0].mxu0
      %v1616 = vadd.f32 %v1337, %v1615
      %v1617 = vpop.f32.mrb[0].mxu0
      %v1618 = vpop.f32.mrb[0].mxu0
      %v1619 = vpop.f32.mrb[0].mxu0
      %1620 = vdwg.mxu0
      %v1621 = vmul.f32 %v1616, 0.1
      %v1622 = vmax.f32 %v1616, %v1621
      %v1623 = vmul.f32 %v1622, %v1405
      %v1624 = vadd.f32 %v1616, %v1623
      %v1625 = vadd.f32 %v1624, %v1411
      %v1626 = vmax.f32 %v1555, %v1625
      %vm1627 = vcmask 400384
      %1628 = vst.msk [vmem:[%s438] sm:$0xff] %vm1627, %v1626
      %p1629 = scmp.lt.s32.totalorder %s38, 1
      %s1630 = scalar_select %p1629, %s38, 1
      %s1631 = smul.addr %s1630, 8
      %s1632 = scalar_lea.vmem %s7, %s1631
      // Predicated region
      $region45: #{vgg_block_forward.2} parent=43 // pred_check
        %p1633 = pneg %p214
      $region46: #{vgg_block_forward.2} parent=43 // pred_check_branch
        %1635 = sbr.rel (%p1633) target = $region48
      $region47: #{vgg_block_forward.2} parent=43 // pred_region
        _
      $region48: #{vgg_block_forward.2} parent=43 // pred_fallthru
        _
    $region44: #{vgg_block_forward.2} parent=5 // pred_fallthru
      _
    %p1636 = scmp.le.s32.totalorder 2, %s33
    // Predicated region
    $region49: #{vgg_block_forward.2} parent=5 // pred_check
      %p1637 = pneg %p1636
    $region50: #{vgg_block_forward.2} parent=5 // pred_check_branch
      %1639 = sbr.rel (%p1637) target = $region52
    $region51: #{vgg_block_forward.2} parent=5 // pred_region
      %s1640 = ssub.s32 %s33, 2
      // Predicated region
      $region53: #{vgg_block_forward.2} parent=51 // pred_check
        %p1641 = pneg %p220
      $region54: #{vgg_block_forward.2} parent=51 // pred_check_branch
        %1643 = sbr.rel (%p1641) target = $region56
      $region55: #{vgg_block_forward.2} parent=51 // pred_region
        %p1644 = scmp.lt.s32.totalorder %s39, 1
        %s1645 = scalar_select %p1644, %s39, 1
        %s1646 = smul.addr %s1645, 8
        %s1647 = scalar_lea.vmem %s7, %s1646
      $region56: #{vgg_block_forward.2} parent=51 // pred_fallthru
        _
    $region52: #{vgg_block_forward.2} parent=5 // pred_fallthru
      _
  $region6: #{vgg_block_forward.2} parent=0 // loop_footer
    %s37 = sadd.s32 1, %s33
  $region7: #{vgg_block_forward.2} parent=0 // loop_footer_branch
    %32 = sbr.rel target = $region3
  $region8: #{vgg_block_forward.2} parent=0 // loop_exit
    _

</llo_original>
